<compile_context>
chip_gen: v6e
topology: v6e:2x2x1
jax: 0.10.0
libtpu: 0.0.40
codegen_flags: <defaults>
</compile_context>

<pallas_src>
import jax
import jax.numpy as jnp
from jax.experimental import pallas as pl
from jax.experimental.pallas import tpu as pltpu


# Batch rows processed per grid step (batch lives on the 128-lane axis).
TILE_B = 512


def _mac_layer(x, w_ref, b_ref, relu):
    """One Linear(+ReLU) layer in batch-on-lanes layout, computed on the VPU.

    x     : (in_feat, T) activations, batch on lanes.
    w_ref : (in_feat, out_feat, 1) weights; w_ref[i] is the (out_feat, 1)
            column of weights fed by input feature i.
    b_ref : (out_feat, 1) bias column.
    Returns (out_feat, T).
    """
    in_feat = w_ref.shape[0]
    out_feat = w_ref.shape[1]
    t = x.shape[1]
    acc = jnp.broadcast_to(b_ref[...], (out_feat, t))      # start from bias
    # Unrolled broadcast-MAC over input features (2 + 16 + 32 = 50 total):
    #   acc[o, :] += w[i, o] * x[i, :]
    for i in range(in_feat):
        acc = acc + w_ref[i] * x[i:i + 1, :]                # (out,1)*(1,T)->(out,T)
    if relu:
        acc = jnp.maximum(acc, 0.0)
    return acc


def _generator_kernel(x_ref, w1_ref, b1_ref, w2_ref, b2_ref, w3_ref, b3_ref,
                      o_ref):
    x = x_ref[...]                                          # (2, T)
    h1 = _mac_layer(x, w1_ref, b1_ref, relu=True)           # (16, T)
    h2 = _mac_layer(h1, w2_ref, b2_ref, relu=True)          # (32, T)
    o_ref[...] = _mac_layer(h2, w3_ref, b3_ref, relu=False)  # (2, T)


def generator_forward(x, params, tile_b=TILE_B):
    """x: (batch, latent_dim) float32. params: dict of (in,out) weights / (1,out) biases."""
    w1, b1, w2, b2, w3, b3 = (params["w1"], params["b1"], params["w2"],
                              params["b2"], params["w3"], params["b3"])
    batch, latent = x.shape
    out_dim = w3.shape[1]

    # Pad batch up to a tile multiple (ragged tail handled wrapper-side), then
    # go to batch-on-lanes layout so every HBM<->VMEM transfer is lane-dense.
    grid_b = pl.cdiv(batch, tile_b)
    batch_pad = grid_b * tile_b
    x_t = jnp.pad(x, ((0, batch_pad - batch), (0, 0))).T    # (latent, B_pad)

    # Weights -> (in, out, 1) so w[i] is the (out,1) column for input feature i;
    # biases -> (out, 1) columns.
    w1k, w2k, w3k = w1[:, :, None], w2[:, :, None], w3[:, :, None]
    b1k, b2k, b3k = b1.reshape(-1, 1), b2.reshape(-1, 1), b3.reshape(-1, 1)

    def const_spec(shape):
        return pl.BlockSpec(shape, lambda i, _n=len(shape): (0,) * _n)

    out_t = pl.pallas_call(
        _generator_kernel,
        out_shape=jax.ShapeDtypeStruct((out_dim, batch_pad), jnp.float32),
        grid=(grid_b,),
        in_specs=[
            pl.BlockSpec((latent, tile_b), lambda i: (0, i)),   # x, batch-tiled
            const_spec(w1k.shape), const_spec(b1k.shape),       # loop-invariant
            const_spec(w2k.shape), const_spec(b2k.shape),
            const_spec(w3k.shape), const_spec(b3k.shape),
        ],
        out_specs=pl.BlockSpec((out_dim, tile_b), lambda i: (0, i)),
        compiler_params=pltpu.CompilerParams(
            dimension_semantics=("parallel",)),                 # megacore over batch
    )(x_t, w1k, b1k, w2k, b2k, w3k, b3k)

    return out_t.T[:batch]                                      # (batch, 2)


def init_generator_params(key, latent_dimension=2):
    """Deterministic init mimicking nn.Linear's uniform(-1/sqrt(fan_in), +) init."""
    dims = [(latent_dimension, 16), (16, 32), (32, 2)]
    params = {}
    keys = jax.random.split(key, 2 * len(dims))
    for i, (fan_in, fan_out) in enumerate(dims):
        bound = 1.0 / (fan_in ** 0.5)
        w = jax.random.uniform(keys[2 * i], (fan_in, fan_out),
                               minval=-bound, maxval=bound, dtype=jnp.float32)
        b = jax.random.uniform(keys[2 * i + 1], (1, fan_out),
                               minval=-bound, maxval=bound, dtype=jnp.float32)
        params[f"w{i + 1}"] = w
        params[f"b{i + 1}"] = b
    return params


def _reference_forward(x, params):
    h1 = jnp.maximum(x @ params["w1"] + params["b1"], 0.0)
    h2 = jnp.maximum(h1 @ params["w2"] + params["b2"], 0.0)
    return h2 @ params["w3"] + params["b3"]


if __name__ == "__main__":
    latent_dimension = 2

    key = jax.random.PRNGKey(0)
    k_params, k_x = jax.random.split(key)
    params = init_generator_params(k_params, latent_dimension)

    # Large enough to exercise the 2-step batch grid / pipelining, still tiny (8 KiB input).
    batch = 1024
    x = jax.random.normal(k_x, (batch, latent_dimension), dtype=jnp.float32)
    out = jax.block_until_ready(generator_forward(x, params))
    ref = _reference_forward(x, params)
    assert out.shape == (batch, 2), out.shape
    assert jnp.allclose(out, ref, atol=1e-5, rtol=1e-5), "mismatch vs reference (B=1024)"

    # Ragged / tiny-batch path (GAN training batch), handled by wrapper-side padding.
    # NOTE: at B~8 the run is launch-overhead dominated; stack invocations to amortize.
    x_small = jax.random.normal(jax.random.PRNGKey(1), (8, latent_dimension),
                                dtype=jnp.float32)
    out_small = jax.block_until_ready(generator_forward(x_small, params))
    ref_small = _reference_forward(x_small, params)
    assert out_small.shape == (8, 2), out_small.shape
    assert jnp.allclose(out_small, ref_small, atol=1e-5, rtol=1e-5), "mismatch vs reference (B=8)"

    print("KERNEL_OK")
</pallas_src>

<mosaic_0001>
module attributes {stable_mosaic.version = 11 : i64} {
  func.func @_generator_kernel(%arg0: i32, %arg1: memref<2x512xf32, #tpu.memory_space<vmem>>, %arg2: memref<2x16x1xf32, #tpu.memory_space<vmem>>, %arg3: memref<16x1xf32, #tpu.memory_space<vmem>>, %arg4: memref<16x32x1xf32, #tpu.memory_space<vmem>>, %arg5: memref<32x1xf32, #tpu.memory_space<vmem>>, %arg6: memref<32x2x1xf32, #tpu.memory_space<vmem>>, %arg7: memref<2x1xf32, #tpu.memory_space<vmem>>, %arg8: memref<2x512xf32, #tpu.memory_space<vmem>>) attributes {dimension_semantics = [#tpu.dimension_semantics<parallel>], iteration_bounds = array<i64: 2>, scalar_prefetch = 0 : i64, scratch_operands = 0 : i64, tpu.core_type = #tpu.core_type<tc>, window_params = [{transform_indices = @transform_0, window_bounds = array<i64: 2, 512>}, {pipeline_mode = #tpu.pipeline_mode<synchronous>, transform_indices = @transform_1, window_bounds = array<i64: 2, 16, 1>}, {pipeline_mode = #tpu.pipeline_mode<synchronous>, transform_indices = @transform_2, window_bounds = array<i64: 16, 1>}, {pipeline_mode = #tpu.pipeline_mode<synchronous>, transform_indices = @transform_3, window_bounds = array<i64: 16, 32, 1>}, {pipeline_mode = #tpu.pipeline_mode<synchronous>, transform_indices = @transform_4, window_bounds = array<i64: 32, 1>}, {pipeline_mode = #tpu.pipeline_mode<synchronous>, transform_indices = @transform_5, window_bounds = array<i64: 32, 2, 1>}, {pipeline_mode = #tpu.pipeline_mode<synchronous>, transform_indices = @transform_6, window_bounds = array<i64: 2, 1>}, {transform_indices = @transform_7, window_bounds = array<i64: 2, 512>}]} {
    %c0 = arith.constant 0 : index
    %c0_0 = arith.constant 0 : index
    %0 = vector.load %arg1[%c0, %c0_0] : memref<2x512xf32, #tpu.memory_space<vmem>>, vector<2x512xf32>
    %c0_1 = arith.constant 0 : index
    %c0_2 = arith.constant 0 : index
    %1 = vector.load %arg3[%c0_1, %c0_2] : memref<16x1xf32, #tpu.memory_space<vmem>>, vector<16x1xf32>
    %2 = vector.shape_cast %1 : vector<16x1xf32> to vector<16x1xf32>
    %3 = vector.broadcast %2 : vector<16x1xf32> to vector<16x512xf32>
    %c0_3 = arith.constant 0 : index
    %c0_4 = arith.constant 0 : index
    %c0_5 = arith.constant 0 : index
    %4 = vector.load %arg2[%c0_3, %c0_4, %c0_5] : memref<2x16x1xf32, #tpu.memory_space<vmem>>, vector<1x16x1xf32>
    %5 = vector.shape_cast %4 : vector<1x16x1xf32> to vector<16x1xf32>
    %6 = vector.extract_strided_slice %0 {offsets = [0, 0], sizes = [1, 512], strides = [1, 1]} : vector<2x512xf32> to vector<1x512xf32>
    %7 = vector.broadcast %5 : vector<16x1xf32> to vector<16x512xf32>
    %8 = vector.broadcast %6 : vector<1x512xf32> to vector<16x512xf32>
    %9 = arith.mulf %7, %8 : vector<16x512xf32>
    %10 = arith.addf %3, %9 : vector<16x512xf32>
    %c1 = arith.constant 1 : index
    %c0_6 = arith.constant 0 : index
    %c0_7 = arith.constant 0 : index
    %11 = vector.load %arg2[%c1, %c0_6, %c0_7] : memref<2x16x1xf32, #tpu.memory_space<vmem>>, vector<1x16x1xf32>
    %12 = vector.shape_cast %11 : vector<1x16x1xf32> to vector<16x1xf32>
    %13 = vector.extract_strided_slice %0 {offsets = [1, 0], sizes = [1, 512], strides = [1, 1]} : vector<2x512xf32> to vector<1x512xf32>
    %14 = vector.broadcast %12 : vector<16x1xf32> to vector<16x512xf32>
    %15 = vector.broadcast %13 : vector<1x512xf32> to vector<16x512xf32>
    %16 = arith.mulf %14, %15 : vector<16x512xf32>
    %17 = arith.addf %10, %16 : vector<16x512xf32>
    %cst = arith.constant 0.000000e+00 : f32
    %18 = vector.broadcast %cst : f32 to vector<16x512xf32>
    %19 = arith.maximumf %17, %18 : vector<16x512xf32>
    %c0_8 = arith.constant 0 : index
    %c0_9 = arith.constant 0 : index
    %20 = vector.load %arg5[%c0_8, %c0_9] : memref<32x1xf32, #tpu.memory_space<vmem>>, vector<32x1xf32>
    %21 = vector.shape_cast %20 : vector<32x1xf32> to vector<32x1xf32>
    %22 = vector.broadcast %21 : vector<32x1xf32> to vector<32x512xf32>
    %c0_10 = arith.constant 0 : index
    %c0_11 = arith.constant 0 : index
    %c0_12 = arith.constant 0 : index
    %23 = vector.load %arg4[%c0_10, %c0_11, %c0_12] : memref<16x32x1xf32, #tpu.memory_space<vmem>>, vector<1x32x1xf32>
    %24 = vector.shape_cast %23 : vector<1x32x1xf32> to vector<32x1xf32>
    %25 = vector.extract_strided_slice %19 {offsets = [0, 0], sizes = [1, 512], strides = [1, 1]} : vector<16x512xf32> to vector<1x512xf32>
    %26 = vector.broadcast %24 : vector<32x1xf32> to vector<32x512xf32>
    %27 = vector.broadcast %25 : vector<1x512xf32> to vector<32x512xf32>
    %28 = arith.mulf %26, %27 : vector<32x512xf32>
    %29 = arith.addf %22, %28 : vector<32x512xf32>
    %c1_13 = arith.constant 1 : index
    %c0_14 = arith.constant 0 : index
    %c0_15 = arith.constant 0 : index
    %30 = vector.load %arg4[%c1_13, %c0_14, %c0_15] : memref<16x32x1xf32, #tpu.memory_space<vmem>>, vector<1x32x1xf32>
    %31 = vector.shape_cast %30 : vector<1x32x1xf32> to vector<32x1xf32>
    %32 = vector.extract_strided_slice %19 {offsets = [1, 0], sizes = [1, 512], strides = [1, 1]} : vector<16x512xf32> to vector<1x512xf32>
    %33 = vector.broadcast %31 : vector<32x1xf32> to vector<32x512xf32>
    %34 = vector.broadcast %32 : vector<1x512xf32> to vector<32x512xf32>
    %35 = arith.mulf %33, %34 : vector<32x512xf32>
    %36 = arith.addf %29, %35 : vector<32x512xf32>
    %c2 = arith.constant 2 : index
    %c0_16 = arith.constant 0 : index
    %c0_17 = arith.constant 0 : index
    %37 = vector.load %arg4[%c2, %c0_16, %c0_17] : memref<16x32x1xf32, #tpu.memory_space<vmem>>, vector<1x32x1xf32>
    %38 = vector.shape_cast %37 : vector<1x32x1xf32> to vector<32x1xf32>
    %39 = vector.extract_strided_slice %19 {offsets = [2, 0], sizes = [1, 512], strides = [1, 1]} : vector<16x512xf32> to vector<1x512xf32>
    %40 = vector.broadcast %38 : vector<32x1xf32> to vector<32x512xf32>
    %41 = vector.broadcast %39 : vector<1x512xf32> to vector<32x512xf32>
    %42 = arith.mulf %40, %41 : vector<32x512xf32>
    %43 = arith.addf %36, %42 : vector<32x512xf32>
    %c3 = arith.constant 3 : index
    %c0_18 = arith.constant 0 : index
    %c0_19 = arith.constant 0 : index
    %44 = vector.load %arg4[%c3, %c0_18, %c0_19] : memref<16x32x1xf32, #tpu.memory_space<vmem>>, vector<1x32x1xf32>
    %45 = vector.shape_cast %44 : vector<1x32x1xf32> to vector<32x1xf32>
    %46 = vector.extract_strided_slice %19 {offsets = [3, 0], sizes = [1, 512], strides = [1, 1]} : vector<16x512xf32> to vector<1x512xf32>
    %47 = vector.broadcast %45 : vector<32x1xf32> to vector<32x512xf32>
    %48 = vector.broadcast %46 : vector<1x512xf32> to vector<32x512xf32>
    %49 = arith.mulf %47, %48 : vector<32x512xf32>
    %50 = arith.addf %43, %49 : vector<32x512xf32>
    %c4 = arith.constant 4 : index
    %c0_20 = arith.constant 0 : index
    %c0_21 = arith.constant 0 : index
    %51 = vector.load %arg4[%c4, %c0_20, %c0_21] : memref<16x32x1xf32, #tpu.memory_space<vmem>>, vector<1x32x1xf32>
    %52 = vector.shape_cast %51 : vector<1x32x1xf32> to vector<32x1xf32>
    %53 = vector.extract_strided_slice %19 {offsets = [4, 0], sizes = [1, 512], strides = [1, 1]} : vector<16x512xf32> to vector<1x512xf32>
    %54 = vector.broadcast %52 : vector<32x1xf32> to vector<32x512xf32>
    %55 = vector.broadcast %53 : vector<1x512xf32> to vector<32x512xf32>
    %56 = arith.mulf %54, %55 : vector<32x512xf32>
    %57 = arith.addf %50, %56 : vector<32x512xf32>
    %c5 = arith.constant 5 : index
    %c0_22 = arith.constant 0 : index
    %c0_23 = arith.constant 0 : index
    %58 = vector.load %arg4[%c5, %c0_22, %c0_23] : memref<16x32x1xf32, #tpu.memory_space<vmem>>, vector<1x32x1xf32>
    %59 = vector.shape_cast %58 : vector<1x32x1xf32> to vector<32x1xf32>
    %60 = vector.extract_strided_slice %19 {offsets = [5, 0], sizes = [1, 512], strides = [1, 1]} : vector<16x512xf32> to vector<1x512xf32>
    %61 = vector.broadcast %59 : vector<32x1xf32> to vector<32x512xf32>
    %62 = vector.broadcast %60 : vector<1x512xf32> to vector<32x512xf32>
    %63 = arith.mulf %61, %62 : vector<32x512xf32>
    %64 = arith.addf %57, %63 : vector<32x512xf32>
    %c6 = arith.constant 6 : index
    %c0_24 = arith.constant 0 : index
    %c0_25 = arith.constant 0 : index
    %65 = vector.load %arg4[%c6, %c0_24, %c0_25] : memref<16x32x1xf32, #tpu.memory_space<vmem>>, vector<1x32x1xf32>
    %66 = vector.shape_cast %65 : vector<1x32x1xf32> to vector<32x1xf32>
    %67 = vector.extract_strided_slice %19 {offsets = [6, 0], sizes = [1, 512], strides = [1, 1]} : vector<16x512xf32> to vector<1x512xf32>
    %68 = vector.broadcast %66 : vector<32x1xf32> to vector<32x512xf32>
    %69 = vector.broadcast %67 : vector<1x512xf32> to vector<32x512xf32>
    %70 = arith.mulf %68, %69 : vector<32x512xf32>
    %71 = arith.addf %64, %70 : vector<32x512xf32>
    %c7 = arith.constant 7 : index
    %c0_26 = arith.constant 0 : index
    %c0_27 = arith.constant 0 : index
    %72 = vector.load %arg4[%c7, %c0_26, %c0_27] : memref<16x32x1xf32, #tpu.memory_space<vmem>>, vector<1x32x1xf32>
    %73 = vector.shape_cast %72 : vector<1x32x1xf32> to vector<32x1xf32>
    %74 = vector.extract_strided_slice %19 {offsets = [7, 0], sizes = [1, 512], strides = [1, 1]} : vector<16x512xf32> to vector<1x512xf32>
    %75 = vector.broadcast %73 : vector<32x1xf32> to vector<32x512xf32>
    %76 = vector.broadcast %74 : vector<1x512xf32> to vector<32x512xf32>
    %77 = arith.mulf %75, %76 : vector<32x512xf32>
    %78 = arith.addf %71, %77 : vector<32x512xf32>
    %c8 = arith.constant 8 : index
    %c0_28 = arith.constant 0 : index
    %c0_29 = arith.constant 0 : index
    %79 = vector.load %arg4[%c8, %c0_28, %c0_29] : memref<16x32x1xf32, #tpu.memory_space<vmem>>, vector<1x32x1xf32>
    %80 = vector.shape_cast %79 : vector<1x32x1xf32> to vector<32x1xf32>
    %81 = vector.extract_strided_slice %19 {offsets = [8, 0], sizes = [1, 512], strides = [1, 1]} : vector<16x512xf32> to vector<1x512xf32>
    %82 = vector.broadcast %80 : vector<32x1xf32> to vector<32x512xf32>
    %83 = vector.broadcast %81 : vector<1x512xf32> to vector<32x512xf32>
    %84 = arith.mulf %82, %83 : vector<32x512xf32>
    %85 = arith.addf %78, %84 : vector<32x512xf32>
    %c9 = arith.constant 9 : index
    %c0_30 = arith.constant 0 : index
    %c0_31 = arith.constant 0 : index
    %86 = vector.load %arg4[%c9, %c0_30, %c0_31] : memref<16x32x1xf32, #tpu.memory_space<vmem>>, vector<1x32x1xf32>
    %87 = vector.shape_cast %86 : vector<1x32x1xf32> to vector<32x1xf32>
    %88 = vector.extract_strided_slice %19 {offsets = [9, 0], sizes = [1, 512], strides = [1, 1]} : vector<16x512xf32> to vector<1x512xf32>
    %89 = vector.broadcast %87 : vector<32x1xf32> to vector<32x512xf32>
    %90 = vector.broadcast %88 : vector<1x512xf32> to vector<32x512xf32>
    %91 = arith.mulf %89, %90 : vector<32x512xf32>
    %92 = arith.addf %85, %91 : vector<32x512xf32>
    %c10 = arith.constant 10 : index
    %c0_32 = arith.constant 0 : index
    %c0_33 = arith.constant 0 : index
    %93 = vector.load %arg4[%c10, %c0_32, %c0_33] : memref<16x32x1xf32, #tpu.memory_space<vmem>>, vector<1x32x1xf32>
    %94 = vector.shape_cast %93 : vector<1x32x1xf32> to vector<32x1xf32>
    %95 = vector.extract_strided_slice %19 {offsets = [10, 0], sizes = [1, 512], strides = [1, 1]} : vector<16x512xf32> to vector<1x512xf32>
    %96 = vector.broadcast %94 : vector<32x1xf32> to vector<32x512xf32>
    %97 = vector.broadcast %95 : vector<1x512xf32> to vector<32x512xf32>
    %98 = arith.mulf %96, %97 : vector<32x512xf32>
    %99 = arith.addf %92, %98 : vector<32x512xf32>
    %c11 = arith.constant 11 : index
    %c0_34 = arith.constant 0 : index
    %c0_35 = arith.constant 0 : index
    %100 = vector.load %arg4[%c11, %c0_34, %c0_35] : memref<16x32x1xf32, #tpu.memory_space<vmem>>, vector<1x32x1xf32>
    %101 = vector.shape_cast %100 : vector<1x32x1xf32> to vector<32x1xf32>
    %102 = vector.extract_strided_slice %19 {offsets = [11, 0], sizes = [1, 512], strides = [1, 1]} : vector<16x512xf32> to vector<1x512xf32>
    %103 = vector.broadcast %101 : vector<32x1xf32> to vector<32x512xf32>
    %104 = vector.broadcast %102 : vector<1x512xf32> to vector<32x512xf32>
    %105 = arith.mulf %103, %104 : vector<32x512xf32>
    %106 = arith.addf %99, %105 : vector<32x512xf32>
    %c12 = arith.constant 12 : index
    %c0_36 = arith.constant 0 : index
    %c0_37 = arith.constant 0 : index
    %107 = vector.load %arg4[%c12, %c0_36, %c0_37] : memref<16x32x1xf32, #tpu.memory_space<vmem>>, vector<1x32x1xf32>
    %108 = vector.shape_cast %107 : vector<1x32x1xf32> to vector<32x1xf32>
    %109 = vector.extract_strided_slice %19 {offsets = [12, 0], sizes = [1, 512], strides = [1, 1]} : vector<16x512xf32> to vector<1x512xf32>
    %110 = vector.broadcast %108 : vector<32x1xf32> to vector<32x512xf32>
    %111 = vector.broadcast %109 : vector<1x512xf32> to vector<32x512xf32>
    %112 = arith.mulf %110, %111 : vector<32x512xf32>
    %113 = arith.addf %106, %112 : vector<32x512xf32>
    %c13 = arith.constant 13 : index
    %c0_38 = arith.constant 0 : index
    %c0_39 = arith.constant 0 : index
    %114 = vector.load %arg4[%c13, %c0_38, %c0_39] : memref<16x32x1xf32, #tpu.memory_space<vmem>>, vector<1x32x1xf32>
    %115 = vector.shape_cast %114 : vector<1x32x1xf32> to vector<32x1xf32>
    %116 = vector.extract_strided_slice %19 {offsets = [13, 0], sizes = [1, 512], strides = [1, 1]} : vector<16x512xf32> to vector<1x512xf32>
    %117 = vector.broadcast %115 : vector<32x1xf32> to vector<32x512xf32>
    %118 = vector.broadcast %116 : vector<1x512xf32> to vector<32x512xf32>
    %119 = arith.mulf %117, %118 : vector<32x512xf32>
    %120 = arith.addf %113, %119 : vector<32x512xf32>
    %c14 = arith.constant 14 : index
    %c0_40 = arith.constant 0 : index
    %c0_41 = arith.constant 0 : index
    %121 = vector.load %arg4[%c14, %c0_40, %c0_41] : memref<16x32x1xf32, #tpu.memory_space<vmem>>, vector<1x32x1xf32>
    %122 = vector.shape_cast %121 : vector<1x32x1xf32> to vector<32x1xf32>
    %123 = vector.extract_strided_slice %19 {offsets = [14, 0], sizes = [1, 512], strides = [1, 1]} : vector<16x512xf32> to vector<1x512xf32>
    %124 = vector.broadcast %122 : vector<32x1xf32> to vector<32x512xf32>
    %125 = vector.broadcast %123 : vector<1x512xf32> to vector<32x512xf32>
    %126 = arith.mulf %124, %125 : vector<32x512xf32>
    %127 = arith.addf %120, %126 : vector<32x512xf32>
    %c15 = arith.constant 15 : index
    %c0_42 = arith.constant 0 : index
    %c0_43 = arith.constant 0 : index
    %128 = vector.load %arg4[%c15, %c0_42, %c0_43] : memref<16x32x1xf32, #tpu.memory_space<vmem>>, vector<1x32x1xf32>
    %129 = vector.shape_cast %128 : vector<1x32x1xf32> to vector<32x1xf32>
    %130 = vector.extract_strided_slice %19 {offsets = [15, 0], sizes = [1, 512], strides = [1, 1]} : vector<16x512xf32> to vector<1x512xf32>
    %131 = vector.broadcast %129 : vector<32x1xf32> to vector<32x512xf32>
    %132 = vector.broadcast %130 : vector<1x512xf32> to vector<32x512xf32>
    %133 = arith.mulf %131, %132 : vector<32x512xf32>
    %134 = arith.addf %127, %133 : vector<32x512xf32>
    %cst_44 = arith.constant 0.000000e+00 : f32
    %135 = vector.broadcast %cst_44 : f32 to vector<32x512xf32>
    %136 = arith.maximumf %134, %135 : vector<32x512xf32>
    %c0_45 = arith.constant 0 : index
    %c0_46 = arith.constant 0 : index
    %137 = vector.load %arg7[%c0_45, %c0_46] : memref<2x1xf32, #tpu.memory_space<vmem>>, vector<2x1xf32>
    %138 = vector.shape_cast %137 : vector<2x1xf32> to vector<2x1xf32>
    %139 = vector.broadcast %138 : vector<2x1xf32> to vector<2x512xf32>
    %c0_47 = arith.constant 0 : index
    %c0_48 = arith.constant 0 : index
    %c0_49 = arith.constant 0 : index
    %140 = vector.load %arg6[%c0_47, %c0_48, %c0_49] : memref<32x2x1xf32, #tpu.memory_space<vmem>>, vector<1x2x1xf32>
    %141 = vector.shape_cast %140 : vector<1x2x1xf32> to vector<2x1xf32>
    %142 = vector.extract_strided_slice %136 {offsets = [0, 0], sizes = [1, 512], strides = [1, 1]} : vector<32x512xf32> to vector<1x512xf32>
    %143 = vector.broadcast %141 : vector<2x1xf32> to vector<2x512xf32>
    %144 = vector.broadcast %142 : vector<1x512xf32> to vector<2x512xf32>
    %145 = arith.mulf %143, %144 : vector<2x512xf32>
    %146 = arith.addf %139, %145 : vector<2x512xf32>
    %c1_50 = arith.constant 1 : index
    %c0_51 = arith.constant 0 : index
    %c0_52 = arith.constant 0 : index
    %147 = vector.load %arg6[%c1_50, %c0_51, %c0_52] : memref<32x2x1xf32, #tpu.memory_space<vmem>>, vector<1x2x1xf32>
    %148 = vector.shape_cast %147 : vector<1x2x1xf32> to vector<2x1xf32>
    %149 = vector.extract_strided_slice %136 {offsets = [1, 0], sizes = [1, 512], strides = [1, 1]} : vector<32x512xf32> to vector<1x512xf32>
    %150 = vector.broadcast %148 : vector<2x1xf32> to vector<2x512xf32>
    %151 = vector.broadcast %149 : vector<1x512xf32> to vector<2x512xf32>
    %152 = arith.mulf %150, %151 : vector<2x512xf32>
    %153 = arith.addf %146, %152 : vector<2x512xf32>
    %c2_53 = arith.constant 2 : index
    %c0_54 = arith.constant 0 : index
    %c0_55 = arith.constant 0 : index
    %154 = vector.load %arg6[%c2_53, %c0_54, %c0_55] : memref<32x2x1xf32, #tpu.memory_space<vmem>>, vector<1x2x1xf32>
    %155 = vector.shape_cast %154 : vector<1x2x1xf32> to vector<2x1xf32>
    %156 = vector.extract_strided_slice %136 {offsets = [2, 0], sizes = [1, 512], strides = [1, 1]} : vector<32x512xf32> to vector<1x512xf32>
    %157 = vector.broadcast %155 : vector<2x1xf32> to vector<2x512xf32>
    %158 = vector.broadcast %156 : vector<1x512xf32> to vector<2x512xf32>
    %159 = arith.mulf %157, %158 : vector<2x512xf32>
    %160 = arith.addf %153, %159 : vector<2x512xf32>
    %c3_56 = arith.constant 3 : index
    %c0_57 = arith.constant 0 : index
    %c0_58 = arith.constant 0 : index
    %161 = vector.load %arg6[%c3_56, %c0_57, %c0_58] : memref<32x2x1xf32, #tpu.memory_space<vmem>>, vector<1x2x1xf32>
    %162 = vector.shape_cast %161 : vector<1x2x1xf32> to vector<2x1xf32>
    %163 = vector.extract_strided_slice %136 {offsets = [3, 0], sizes = [1, 512], strides = [1, 1]} : vector<32x512xf32> to vector<1x512xf32>
    %164 = vector.broadcast %162 : vector<2x1xf32> to vector<2x512xf32>
    %165 = vector.broadcast %163 : vector<1x512xf32> to vector<2x512xf32>
    %166 = arith.mulf %164, %165 : vector<2x512xf32>
    %167 = arith.addf %160, %166 : vector<2x512xf32>
    %c4_59 = arith.constant 4 : index
    %c0_60 = arith.constant 0 : index
    %c0_61 = arith.constant 0 : index
    %168 = vector.load %arg6[%c4_59, %c0_60, %c0_61] : memref<32x2x1xf32, #tpu.memory_space<vmem>>, vector<1x2x1xf32>
    %169 = vector.shape_cast %168 : vector<1x2x1xf32> to vector<2x1xf32>
    %170 = vector.extract_strided_slice %136 {offsets = [4, 0], sizes = [1, 512], strides = [1, 1]} : vector<32x512xf32> to vector<1x512xf32>
    %171 = vector.broadcast %169 : vector<2x1xf32> to vector<2x512xf32>
    %172 = vector.broadcast %170 : vector<1x512xf32> to vector<2x512xf32>
    %173 = arith.mulf %171, %172 : vector<2x512xf32>
    %174 = arith.addf %167, %173 : vector<2x512xf32>
    %c5_62 = arith.constant 5 : index
    %c0_63 = arith.constant 0 : index
    %c0_64 = arith.constant 0 : index
    %175 = vector.load %arg6[%c5_62, %c0_63, %c0_64] : memref<32x2x1xf32, #tpu.memory_space<vmem>>, vector<1x2x1xf32>
    %176 = vector.shape_cast %175 : vector<1x2x1xf32> to vector<2x1xf32>
    %177 = vector.extract_strided_slice %136 {offsets = [5, 0], sizes = [1, 512], strides = [1, 1]} : vector<32x512xf32> to vector<1x512xf32>
    %178 = vector.broadcast %176 : vector<2x1xf32> to vector<2x512xf32>
    %179 = vector.broadcast %177 : vector<1x512xf32> to vector<2x512xf32>
    %180 = arith.mulf %178, %179 : vector<2x512xf32>
    %181 = arith.addf %174, %180 : vector<2x512xf32>
    %c6_65 = arith.constant 6 : index
    %c0_66 = arith.constant 0 : index
    %c0_67 = arith.constant 0 : index
    %182 = vector.load %arg6[%c6_65, %c0_66, %c0_67] : memref<32x2x1xf32, #tpu.memory_space<vmem>>, vector<1x2x1xf32>
    %183 = vector.shape_cast %182 : vector<1x2x1xf32> to vector<2x1xf32>
    %184 = vector.extract_strided_slice %136 {offsets = [6, 0], sizes = [1, 512], strides = [1, 1]} : vector<32x512xf32> to vector<1x512xf32>
    %185 = vector.broadcast %183 : vector<2x1xf32> to vector<2x512xf32>
    %186 = vector.broadcast %184 : vector<1x512xf32> to vector<2x512xf32>
    %187 = arith.mulf %185, %186 : vector<2x512xf32>
    %188 = arith.addf %181, %187 : vector<2x512xf32>
    %c7_68 = arith.constant 7 : index
    %c0_69 = arith.constant 0 : index
    %c0_70 = arith.constant 0 : index
    %189 = vector.load %arg6[%c7_68, %c0_69, %c0_70] : memref<32x2x1xf32, #tpu.memory_space<vmem>>, vector<1x2x1xf32>
    %190 = vector.shape_cast %189 : vector<1x2x1xf32> to vector<2x1xf32>
    %191 = vector.extract_strided_slice %136 {offsets = [7, 0], sizes = [1, 512], strides = [1, 1]} : vector<32x512xf32> to vector<1x512xf32>
    %192 = vector.broadcast %190 : vector<2x1xf32> to vector<2x512xf32>
    %193 = vector.broadcast %191 : vector<1x512xf32> to vector<2x512xf32>
    %194 = arith.mulf %192, %193 : vector<2x512xf32>
    %195 = arith.addf %188, %194 : vector<2x512xf32>
    %c8_71 = arith.constant 8 : index
    %c0_72 = arith.constant 0 : index
    %c0_73 = arith.constant 0 : index
    %196 = vector.load %arg6[%c8_71, %c0_72, %c0_73] : memref<32x2x1xf32, #tpu.memory_space<vmem>>, vector<1x2x1xf32>
    %197 = vector.shape_cast %196 : vector<1x2x1xf32> to vector<2x1xf32>
    %198 = vector.extract_strided_slice %136 {offsets = [8, 0], sizes = [1, 512], strides = [1, 1]} : vector<32x512xf32> to vector<1x512xf32>
    %199 = vector.broadcast %197 : vector<2x1xf32> to vector<2x512xf32>
    %200 = vector.broadcast %198 : vector<1x512xf32> to vector<2x512xf32>
    %201 = arith.mulf %199, %200 : vector<2x512xf32>
    %202 = arith.addf %195, %201 : vector<2x512xf32>
    %c9_74 = arith.constant 9 : index
    %c0_75 = arith.constant 0 : index
    %c0_76 = arith.constant 0 : index
    %203 = vector.load %arg6[%c9_74, %c0_75, %c0_76] : memref<32x2x1xf32, #tpu.memory_space<vmem>>, vector<1x2x1xf32>
    %204 = vector.shape_cast %203 : vector<1x2x1xf32> to vector<2x1xf32>
    %205 = vector.extract_strided_slice %136 {offsets = [9, 0], sizes = [1, 512], strides = [1, 1]} : vector<32x512xf32> to vector<1x512xf32>
    %206 = vector.broadcast %204 : vector<2x1xf32> to vector<2x512xf32>
    %207 = vector.broadcast %205 : vector<1x512xf32> to vector<2x512xf32>
    %208 = arith.mulf %206, %207 : vector<2x512xf32>
    %209 = arith.addf %202, %208 : vector<2x512xf32>
    %c10_77 = arith.constant 10 : index
    %c0_78 = arith.constant 0 : index
    %c0_79 = arith.constant 0 : index
    %210 = vector.load %arg6[%c10_77, %c0_78, %c0_79] : memref<32x2x1xf32, #tpu.memory_space<vmem>>, vector<1x2x1xf32>
    %211 = vector.shape_cast %210 : vector<1x2x1xf32> to vector<2x1xf32>
    %212 = vector.extract_strided_slice %136 {offsets = [10, 0], sizes = [1, 512], strides = [1, 1]} : vector<32x512xf32> to vector<1x512xf32>
    %213 = vector.broadcast %211 : vector<2x1xf32> to vector<2x512xf32>
    %214 = vector.broadcast %212 : vector<1x512xf32> to vector<2x512xf32>
    %215 = arith.mulf %213, %214 : vector<2x512xf32>
    %216 = arith.addf %209, %215 : vector<2x512xf32>
    %c11_80 = arith.constant 11 : index
    %c0_81 = arith.constant 0 : index
    %c0_82 = arith.constant 0 : index
    %217 = vector.load %arg6[%c11_80, %c0_81, %c0_82] : memref<32x2x1xf32, #tpu.memory_space<vmem>>, vector<1x2x1xf32>
    %218 = vector.shape_cast %217 : vector<1x2x1xf32> to vector<2x1xf32>
    %219 = vector.extract_strided_slice %136 {offsets = [11, 0], sizes = [1, 512], strides = [1, 1]} : vector<32x512xf32> to vector<1x512xf32>
    %220 = vector.broadcast %218 : vector<2x1xf32> to vector<2x512xf32>
    %221 = vector.broadcast %219 : vector<1x512xf32> to vector<2x512xf32>
    %222 = arith.mulf %220, %221 : vector<2x512xf32>
    %223 = arith.addf %216, %222 : vector<2x512xf32>
    %c12_83 = arith.constant 12 : index
    %c0_84 = arith.constant 0 : index
    %c0_85 = arith.constant 0 : index
    %224 = vector.load %arg6[%c12_83, %c0_84, %c0_85] : memref<32x2x1xf32, #tpu.memory_space<vmem>>, vector<1x2x1xf32>
    %225 = vector.shape_cast %224 : vector<1x2x1xf32> to vector<2x1xf32>
    %226 = vector.extract_strided_slice %136 {offsets = [12, 0], sizes = [1, 512], strides = [1, 1]} : vector<32x512xf32> to vector<1x512xf32>
    %227 = vector.broadcast %225 : vector<2x1xf32> to vector<2x512xf32>
    %228 = vector.broadcast %226 : vector<1x512xf32> to vector<2x512xf32>
    %229 = arith.mulf %227, %228 : vector<2x512xf32>
    %230 = arith.addf %223, %229 : vector<2x512xf32>
    %c13_86 = arith.constant 13 : index
    %c0_87 = arith.constant 0 : index
    %c0_88 = arith.constant 0 : index
    %231 = vector.load %arg6[%c13_86, %c0_87, %c0_88] : memref<32x2x1xf32, #tpu.memory_space<vmem>>, vector<1x2x1xf32>
    %232 = vector.shape_cast %231 : vector<1x2x1xf32> to vector<2x1xf32>
    %233 = vector.extract_strided_slice %136 {offsets = [13, 0], sizes = [1, 512], strides = [1, 1]} : vector<32x512xf32> to vector<1x512xf32>
    %234 = vector.broadcast %232 : vector<2x1xf32> to vector<2x512xf32>
    %235 = vector.broadcast %233 : vector<1x512xf32> to vector<2x512xf32>
    %236 = arith.mulf %234, %235 : vector<2x512xf32>
    %237 = arith.addf %230, %236 : vector<2x512xf32>
    %c14_89 = arith.constant 14 : index
    %c0_90 = arith.constant 0 : index
    %c0_91 = arith.constant 0 : index
    %238 = vector.load %arg6[%c14_89, %c0_90, %c0_91] : memref<32x2x1xf32, #tpu.memory_space<vmem>>, vector<1x2x1xf32>
    %239 = vector.shape_cast %238 : vector<1x2x1xf32> to vector<2x1xf32>
    %240 = vector.extract_strided_slice %136 {offsets = [14, 0], sizes = [1, 512], strides = [1, 1]} : vector<32x512xf32> to vector<1x512xf32>
    %241 = vector.broadcast %239 : vector<2x1xf32> to vector<2x512xf32>
    %242 = vector.broadcast %240 : vector<1x512xf32> to vector<2x512xf32>
    %243 = arith.mulf %241, %242 : vector<2x512xf32>
    %244 = arith.addf %237, %243 : vector<2x512xf32>
    %c15_92 = arith.constant 15 : index
    %c0_93 = arith.constant 0 : index
    %c0_94 = arith.constant 0 : index
    %245 = vector.load %arg6[%c15_92, %c0_93, %c0_94] : memref<32x2x1xf32, #tpu.memory_space<vmem>>, vector<1x2x1xf32>
    %246 = vector.shape_cast %245 : vector<1x2x1xf32> to vector<2x1xf32>
    %247 = vector.extract_strided_slice %136 {offsets = [15, 0], sizes = [1, 512], strides = [1, 1]} : vector<32x512xf32> to vector<1x512xf32>
    %248 = vector.broadcast %246 : vector<2x1xf32> to vector<2x512xf32>
    %249 = vector.broadcast %247 : vector<1x512xf32> to vector<2x512xf32>
    %250 = arith.mulf %248, %249 : vector<2x512xf32>
    %251 = arith.addf %244, %250 : vector<2x512xf32>
    %c16 = arith.constant 16 : index
    %c0_95 = arith.constant 0 : index
    %c0_96 = arith.constant 0 : index
    %252 = vector.load %arg6[%c16, %c0_95, %c0_96] : memref<32x2x1xf32, #tpu.memory_space<vmem>>, vector<1x2x1xf32>
    %253 = vector.shape_cast %252 : vector<1x2x1xf32> to vector<2x1xf32>
    %254 = vector.extract_strided_slice %136 {offsets = [16, 0], sizes = [1, 512], strides = [1, 1]} : vector<32x512xf32> to vector<1x512xf32>
    %255 = vector.broadcast %253 : vector<2x1xf32> to vector<2x512xf32>
    %256 = vector.broadcast %254 : vector<1x512xf32> to vector<2x512xf32>
    %257 = arith.mulf %255, %256 : vector<2x512xf32>
    %258 = arith.addf %251, %257 : vector<2x512xf32>
    %c17 = arith.constant 17 : index
    %c0_97 = arith.constant 0 : index
    %c0_98 = arith.constant 0 : index
    %259 = vector.load %arg6[%c17, %c0_97, %c0_98] : memref<32x2x1xf32, #tpu.memory_space<vmem>>, vector<1x2x1xf32>
    %260 = vector.shape_cast %259 : vector<1x2x1xf32> to vector<2x1xf32>
    %261 = vector.extract_strided_slice %136 {offsets = [17, 0], sizes = [1, 512], strides = [1, 1]} : vector<32x512xf32> to vector<1x512xf32>
    %262 = vector.broadcast %260 : vector<2x1xf32> to vector<2x512xf32>
    %263 = vector.broadcast %261 : vector<1x512xf32> to vector<2x512xf32>
    %264 = arith.mulf %262, %263 : vector<2x512xf32>
    %265 = arith.addf %258, %264 : vector<2x512xf32>
    %c18 = arith.constant 18 : index
    %c0_99 = arith.constant 0 : index
    %c0_100 = arith.constant 0 : index
    %266 = vector.load %arg6[%c18, %c0_99, %c0_100] : memref<32x2x1xf32, #tpu.memory_space<vmem>>, vector<1x2x1xf32>
    %267 = vector.shape_cast %266 : vector<1x2x1xf32> to vector<2x1xf32>
    %268 = vector.extract_strided_slice %136 {offsets = [18, 0], sizes = [1, 512], strides = [1, 1]} : vector<32x512xf32> to vector<1x512xf32>
    %269 = vector.broadcast %267 : vector<2x1xf32> to vector<2x512xf32>
    %270 = vector.broadcast %268 : vector<1x512xf32> to vector<2x512xf32>
    %271 = arith.mulf %269, %270 : vector<2x512xf32>
    %272 = arith.addf %265, %271 : vector<2x512xf32>
    %c19 = arith.constant 19 : index
    %c0_101 = arith.constant 0 : index
    %c0_102 = arith.constant 0 : index
    %273 = vector.load %arg6[%c19, %c0_101, %c0_102] : memref<32x2x1xf32, #tpu.memory_space<vmem>>, vector<1x2x1xf32>
    %274 = vector.shape_cast %273 : vector<1x2x1xf32> to vector<2x1xf32>
    %275 = vector.extract_strided_slice %136 {offsets = [19, 0], sizes = [1, 512], strides = [1, 1]} : vector<32x512xf32> to vector<1x512xf32>
    %276 = vector.broadcast %274 : vector<2x1xf32> to vector<2x512xf32>
    %277 = vector.broadcast %275 : vector<1x512xf32> to vector<2x512xf32>
    %278 = arith.mulf %276, %277 : vector<2x512xf32>
    %279 = arith.addf %272, %278 : vector<2x512xf32>
    %c20 = arith.constant 20 : index
    %c0_103 = arith.constant 0 : index
    %c0_104 = arith.constant 0 : index
    %280 = vector.load %arg6[%c20, %c0_103, %c0_104] : memref<32x2x1xf32, #tpu.memory_space<vmem>>, vector<1x2x1xf32>
    %281 = vector.shape_cast %280 : vector<1x2x1xf32> to vector<2x1xf32>
    %282 = vector.extract_strided_slice %136 {offsets = [20, 0], sizes = [1, 512], strides = [1, 1]} : vector<32x512xf32> to vector<1x512xf32>
    %283 = vector.broadcast %281 : vector<2x1xf32> to vector<2x512xf32>
    %284 = vector.broadcast %282 : vector<1x512xf32> to vector<2x512xf32>
    %285 = arith.mulf %283, %284 : vector<2x512xf32>
    %286 = arith.addf %279, %285 : vector<2x512xf32>
    %c21 = arith.constant 21 : index
    %c0_105 = arith.constant 0 : index
    %c0_106 = arith.constant 0 : index
    %287 = vector.load %arg6[%c21, %c0_105, %c0_106] : memref<32x2x1xf32, #tpu.memory_space<vmem>>, vector<1x2x1xf32>
    %288 = vector.shape_cast %287 : vector<1x2x1xf32> to vector<2x1xf32>
    %289 = vector.extract_strided_slice %136 {offsets = [21, 0], sizes = [1, 512], strides = [1, 1]} : vector<32x512xf32> to vector<1x512xf32>
    %290 = vector.broadcast %288 : vector<2x1xf32> to vector<2x512xf32>
    %291 = vector.broadcast %289 : vector<1x512xf32> to vector<2x512xf32>
    %292 = arith.mulf %290, %291 : vector<2x512xf32>
    %293 = arith.addf %286, %292 : vector<2x512xf32>
    %c22 = arith.constant 22 : index
    %c0_107 = arith.constant 0 : index
    %c0_108 = arith.constant 0 : index
    %294 = vector.load %arg6[%c22, %c0_107, %c0_108] : memref<32x2x1xf32, #tpu.memory_space<vmem>>, vector<1x2x1xf32>
    %295 = vector.shape_cast %294 : vector<1x2x1xf32> to vector<2x1xf32>
    %296 = vector.extract_strided_slice %136 {offsets = [22, 0], sizes = [1, 512], strides = [1, 1]} : vector<32x512xf32> to vector<1x512xf32>
    %297 = vector.broadcast %295 : vector<2x1xf32> to vector<2x512xf32>
    %298 = vector.broadcast %296 : vector<1x512xf32> to vector<2x512xf32>
    %299 = arith.mulf %297, %298 : vector<2x512xf32>
    %300 = arith.addf %293, %299 : vector<2x512xf32>
    %c23 = arith.constant 23 : index
    %c0_109 = arith.constant 0 : index
    %c0_110 = arith.constant 0 : index
    %301 = vector.load %arg6[%c23, %c0_109, %c0_110] : memref<32x2x1xf32, #tpu.memory_space<vmem>>, vector<1x2x1xf32>
    %302 = vector.shape_cast %301 : vector<1x2x1xf32> to vector<2x1xf32>
    %303 = vector.extract_strided_slice %136 {offsets = [23, 0], sizes = [1, 512], strides = [1, 1]} : vector<32x512xf32> to vector<1x512xf32>
    %304 = vector.broadcast %302 : vector<2x1xf32> to vector<2x512xf32>
    %305 = vector.broadcast %303 : vector<1x512xf32> to vector<2x512xf32>
    %306 = arith.mulf %304, %305 : vector<2x512xf32>
    %307 = arith.addf %300, %306 : vector<2x512xf32>
    %c24 = arith.constant 24 : index
    %c0_111 = arith.constant 0 : index
    %c0_112 = arith.constant 0 : index
    %308 = vector.load %arg6[%c24, %c0_111, %c0_112] : memref<32x2x1xf32, #tpu.memory_space<vmem>>, vector<1x2x1xf32>
    %309 = vector.shape_cast %308 : vector<1x2x1xf32> to vector<2x1xf32>
    %310 = vector.extract_strided_slice %136 {offsets = [24, 0], sizes = [1, 512], strides = [1, 1]} : vector<32x512xf32> to vector<1x512xf32>
    %311 = vector.broadcast %309 : vector<2x1xf32> to vector<2x512xf32>
    %312 = vector.broadcast %310 : vector<1x512xf32> to vector<2x512xf32>
    %313 = arith.mulf %311, %312 : vector<2x512xf32>
    %314 = arith.addf %307, %313 : vector<2x512xf32>
    %c25 = arith.constant 25 : index
    %c0_113 = arith.constant 0 : index
    %c0_114 = arith.constant 0 : index
    %315 = vector.load %arg6[%c25, %c0_113, %c0_114] : memref<32x2x1xf32, #tpu.memory_space<vmem>>, vector<1x2x1xf32>
    %316 = vector.shape_cast %315 : vector<1x2x1xf32> to vector<2x1xf32>
    %317 = vector.extract_strided_slice %136 {offsets = [25, 0], sizes = [1, 512], strides = [1, 1]} : vector<32x512xf32> to vector<1x512xf32>
    %318 = vector.broadcast %316 : vector<2x1xf32> to vector<2x512xf32>
    %319 = vector.broadcast %317 : vector<1x512xf32> to vector<2x512xf32>
    %320 = arith.mulf %318, %319 : vector<2x512xf32>
    %321 = arith.addf %314, %320 : vector<2x512xf32>
    %c26 = arith.constant 26 : index
    %c0_115 = arith.constant 0 : index
    %c0_116 = arith.constant 0 : index
    %322 = vector.load %arg6[%c26, %c0_115, %c0_116] : memref<32x2x1xf32, #tpu.memory_space<vmem>>, vector<1x2x1xf32>
    %323 = vector.shape_cast %322 : vector<1x2x1xf32> to vector<2x1xf32>
    %324 = vector.extract_strided_slice %136 {offsets = [26, 0], sizes = [1, 512], strides = [1, 1]} : vector<32x512xf32> to vector<1x512xf32>
    %325 = vector.broadcast %323 : vector<2x1xf32> to vector<2x512xf32>
    %326 = vector.broadcast %324 : vector<1x512xf32> to vector<2x512xf32>
    %327 = arith.mulf %325, %326 : vector<2x512xf32>
    %328 = arith.addf %321, %327 : vector<2x512xf32>
    %c27 = arith.constant 27 : index
    %c0_117 = arith.constant 0 : index
    %c0_118 = arith.constant 0 : index
    %329 = vector.load %arg6[%c27, %c0_117, %c0_118] : memref<32x2x1xf32, #tpu.memory_space<vmem>>, vector<1x2x1xf32>
    %330 = vector.shape_cast %329 : vector<1x2x1xf32> to vector<2x1xf32>
    %331 = vector.extract_strided_slice %136 {offsets = [27, 0], sizes = [1, 512], strides = [1, 1]} : vector<32x512xf32> to vector<1x512xf32>
    %332 = vector.broadcast %330 : vector<2x1xf32> to vector<2x512xf32>
    %333 = vector.broadcast %331 : vector<1x512xf32> to vector<2x512xf32>
    %334 = arith.mulf %332, %333 : vector<2x512xf32>
    %335 = arith.addf %328, %334 : vector<2x512xf32>
    %c28 = arith.constant 28 : index
    %c0_119 = arith.constant 0 : index
    %c0_120 = arith.constant 0 : index
    %336 = vector.load %arg6[%c28, %c0_119, %c0_120] : memref<32x2x1xf32, #tpu.memory_space<vmem>>, vector<1x2x1xf32>
    %337 = vector.shape_cast %336 : vector<1x2x1xf32> to vector<2x1xf32>
    %338 = vector.extract_strided_slice %136 {offsets = [28, 0], sizes = [1, 512], strides = [1, 1]} : vector<32x512xf32> to vector<1x512xf32>
    %339 = vector.broadcast %337 : vector<2x1xf32> to vector<2x512xf32>
    %340 = vector.broadcast %338 : vector<1x512xf32> to vector<2x512xf32>
    %341 = arith.mulf %339, %340 : vector<2x512xf32>
    %342 = arith.addf %335, %341 : vector<2x512xf32>
    %c29 = arith.constant 29 : index
    %c0_121 = arith.constant 0 : index
    %c0_122 = arith.constant 0 : index
    %343 = vector.load %arg6[%c29, %c0_121, %c0_122] : memref<32x2x1xf32, #tpu.memory_space<vmem>>, vector<1x2x1xf32>
    %344 = vector.shape_cast %343 : vector<1x2x1xf32> to vector<2x1xf32>
    %345 = vector.extract_strided_slice %136 {offsets = [29, 0], sizes = [1, 512], strides = [1, 1]} : vector<32x512xf32> to vector<1x512xf32>
    %346 = vector.broadcast %344 : vector<2x1xf32> to vector<2x512xf32>
    %347 = vector.broadcast %345 : vector<1x512xf32> to vector<2x512xf32>
    %348 = arith.mulf %346, %347 : vector<2x512xf32>
    %349 = arith.addf %342, %348 : vector<2x512xf32>
    %c30 = arith.constant 30 : index
    %c0_123 = arith.constant 0 : index
    %c0_124 = arith.constant 0 : index
    %350 = vector.load %arg6[%c30, %c0_123, %c0_124] : memref<32x2x1xf32, #tpu.memory_space<vmem>>, vector<1x2x1xf32>
    %351 = vector.shape_cast %350 : vector<1x2x1xf32> to vector<2x1xf32>
    %352 = vector.extract_strided_slice %136 {offsets = [30, 0], sizes = [1, 512], strides = [1, 1]} : vector<32x512xf32> to vector<1x512xf32>
    %353 = vector.broadcast %351 : vector<2x1xf32> to vector<2x512xf32>
    %354 = vector.broadcast %352 : vector<1x512xf32> to vector<2x512xf32>
    %355 = arith.mulf %353, %354 : vector<2x512xf32>
    %356 = arith.addf %349, %355 : vector<2x512xf32>
    %c31 = arith.constant 31 : index
    %c0_125 = arith.constant 0 : index
    %c0_126 = arith.constant 0 : index
    %357 = vector.load %arg6[%c31, %c0_125, %c0_126] : memref<32x2x1xf32, #tpu.memory_space<vmem>>, vector<1x2x1xf32>
    %358 = vector.shape_cast %357 : vector<1x2x1xf32> to vector<2x1xf32>
    %359 = vector.extract_strided_slice %136 {offsets = [31, 0], sizes = [1, 512], strides = [1, 1]} : vector<32x512xf32> to vector<1x512xf32>
    %360 = vector.broadcast %358 : vector<2x1xf32> to vector<2x512xf32>
    %361 = vector.broadcast %359 : vector<1x512xf32> to vector<2x512xf32>
    %362 = arith.mulf %360, %361 : vector<2x512xf32>
    %363 = arith.addf %356, %362 : vector<2x512xf32>
    %c0_127 = arith.constant 0 : index
    %c0_128 = arith.constant 0 : index
    %364 = vector.load %arg8[%c0_127, %c0_128] : memref<2x512xf32, #tpu.memory_space<vmem>>, vector<2x512xf32>
    tpu.vector_store %arg8[%c0_127, %c0_128], %363 {strides = array<i32>} : memref<2x512xf32, #tpu.memory_space<vmem>>, vector<2x512xf32>,
    return
  }
  func.func @transform_0(%arg0: i32) -> (i32, i32) {
    %c0_i32 = arith.constant 0 : i32
    %c0_i32_0 = arith.constant 0 : i32
    return %c0_i32, %arg0 : i32, i32
  }
  func.func @transform_1(%arg0: i32) -> (i32, i32, i32) {
    %c0_i32 = arith.constant 0 : i32
    %c0_i32_0 = arith.constant 0 : i32
    %c0_i32_1 = arith.constant 0 : i32
    %c0_i32_2 = arith.constant 0 : i32
    return %c0_i32, %c0_i32_0, %c0_i32_1 : i32, i32, i32
  }
  func.func @transform_2(%arg0: i32) -> (i32, i32) {
    %c0_i32 = arith.constant 0 : i32
    %c0_i32_0 = arith.constant 0 : i32
    %c0_i32_1 = arith.constant 0 : i32
    return %c0_i32, %c0_i32_0 : i32, i32
  }
  func.func @transform_3(%arg0: i32) -> (i32, i32, i32) {
    %c0_i32 = arith.constant 0 : i32
    %c0_i32_0 = arith.constant 0 : i32
    %c0_i32_1 = arith.constant 0 : i32
    %c0_i32_2 = arith.constant 0 : i32
    return %c0_i32, %c0_i32_0, %c0_i32_1 : i32, i32, i32
  }
  func.func @transform_4(%arg0: i32) -> (i32, i32) {
    %c0_i32 = arith.constant 0 : i32
    %c0_i32_0 = arith.constant 0 : i32
    %c0_i32_1 = arith.constant 0 : i32
    return %c0_i32, %c0_i32_0 : i32, i32
  }
  func.func @transform_5(%arg0: i32) -> (i32, i32, i32) {
    %c0_i32 = arith.constant 0 : i32
    %c0_i32_0 = arith.constant 0 : i32
    %c0_i32_1 = arith.constant 0 : i32
    %c0_i32_2 = arith.constant 0 : i32
    return %c0_i32, %c0_i32_0, %c0_i32_1 : i32, i32, i32
  }
  func.func @transform_6(%arg0: i32) -> (i32, i32) {
    %c0_i32 = arith.constant 0 : i32
    %c0_i32_0 = arith.constant 0 : i32
    %c0_i32_1 = arith.constant 0 : i32
    return %c0_i32, %c0_i32_0 : i32, i32
  }
  func.func @transform_7(%arg0: i32) -> (i32, i32) {
    %c0_i32 = arith.constant 0 : i32
    %c0_i32_0 = arith.constant 0 : i32
    return %c0_i32, %arg0 : i32, i32
  }
}

</mosaic_0001>

<llo_original>
// kernel: tpu_custom_call.1
$region0: #{tpu_custom_call.1}
  #allocation0 [shape = 'u32[]', space=smem, size = 0x4, offset = 0x4, fixed_abs, tag = 'smem constant byte address 0x4 - core index']
  #allocation1 [shape = 'u32[144,128]{1,0:T(1,128)}', space=vmem, size = 0x12000, scoped, tag = 'internal scratch']
  %s0 = inlined_call_operand.vmem [shape: f32[2,1024], index: 0, kind: input, shape index: {}]
  %s1 = inlined_call_operand.vmem [shape: f32[2,16,1], index: 1, kind: input, shape index: {}]
  %s2 = inlined_call_operand.vmem [shape: f32[16,1], index: 2, kind: input, shape index: {}]
  %s3 = inlined_call_operand.vmem [shape: f32[16,32,1], index: 3, kind: input, shape index: {}]
  %s4 = inlined_call_operand.vmem [shape: f32[32,1], index: 4, kind: input, shape index: {}]
  %s5 = inlined_call_operand.vmem [shape: f32[32,2,1], index: 5, kind: input, shape index: {}]
  %s6 = inlined_call_operand.vmem [shape: f32[2,1], index: 6, kind: input, shape index: {}]
  %s7 = inlined_call_operand.hbm [shape: f32[2,1024], index: 7, kind: output, shape index: {}]
  %s8 = sld [smem:[#allocation0]]
  $region61: #{tpu_custom_call.1} parent=0
    _
  %s10 = ssub.s32 1, %s8
  %s11 = scalar_select 0, %s10, %s8
  $region1: #{tpu_custom_call.1} parent=0
    #allocation2 [shape = 'u8[8192]{0}', space=vmem, size = 0x2000, scoped, tag = 'output window, operand 0']
    #allocation3 [shape = 's32[2]{0}', space=sflag, size = 0x8, scoped, tag = 'scoped memory for tpu_custom_call.1']
    %12 = vsyncpa [#allocation3], 0
    %s13 = scalar_lea.sflag [#allocation3], 1
    %14 = vsyncpa %s13, 0
    loop: start=0, step=1, limit=4
    $region2: #{tpu_custom_call.1} parent=1 // loop_pre_header
      _
    $region3: #{tpu_custom_call.1} parent=1 // loop_header
      %s16 = sphi 0, %s20
      %p17 = scmp.ge.s32.totalorder %s16, 4
      %s26 = sphi 0, %s28
      %s29 = sphi 0, %s26
      %s30 = sphi 0, %s29
      %s46 = sphi 0, %s30
      %s50 = sphi 0, %s50
      %s52 = sphi 0, %s50
      %s53 = sphi 0, %s52
      %s67 = sphi 0, %s53
      %s71 = sphi 0, %s71
      %s73 = sphi 0, %s71
      %s74 = sphi 0, %s73
      %s88 = sphi 0, %s74
      %s92 = sphi 0, %s92
      %s94 = sphi 0, %s92
      %s95 = sphi 0, %s94
      %s109 = sphi 0, %s95
      %s113 = sphi 0, %s113
      %s115 = sphi 0, %s113
      %s116 = sphi 0, %s115
      %s130 = sphi 0, %s116
      %s134 = sphi 0, %s134
      %s136 = sphi 0, %s134
      %s137 = sphi 0, %s136
      %s151 = sphi 0, %s137
      %s155 = sphi 0, %s155
      %s157 = sphi 0, %s155
      %s158 = sphi 0, %s157
      %s172 = sphi 0, %s158
      %s178 = sphi 0, %s180
      %s181 = sphi 0, %s178
      %s182 = sphi 0, %s181
      %s198 = sphi 0, %s182
    $region4: #{tpu_custom_call.1} parent=1 // loop_header_branch
      %19 = sbr.rel (%p17) target = $region8
    $region5: #{tpu_custom_call.1} parent=1 // loop_body
      %s21 = ssub.s32 %s16, 1
      %s22 = ssub.s32 %s16, 2
      %s23 = sadd.s32 %s16, 1
      %s24 = ssub.s32 %s16, %s23
      %p25 = scmp.eq.s32.totalorder %s24, 0
      %s27 = sadd.s32 %s26, 1
      %s28 = scalar_select %p25, %s26, %s27
      %p31 = pneg %p25
      %p32 = scmp.eq.s32.totalorder %s16, 1
      %p33 = por %p31, %p32
      %p34 = scmp.ne.s32.totalorder %s26, %s29
      %p35 = scmp.eq.s32.totalorder %s16, 0
      %p36 = por %p34, %p35
      %p37 = scmp.ne.s32.totalorder %s26, %s29
      %p38 = scmp.eq.s32.totalorder %s21, 1
      %p39 = por %p37, %p38
      %p40 = scmp.ne.s32.totalorder %s29, %s30
      %p41 = scmp.eq.s32.totalorder %s21, 0
      %p42 = por %p40, %p41
      %p43 = scmp.ne.s32.totalorder %s29, %s30
      %p44 = scmp.eq.s32.totalorder %s22, 1
      %p45 = por %p43, %p44
      %p47 = scmp.ne.s32.totalorder %s30, %s46
      %p48 = scmp.eq.s32.totalorder %s22, 0
      %p49 = por %p47, %p48
      %s51 = sadd.s32 %s50, 1
      %p54 = scmp.eq.s32.totalorder %s16, 1
      %p55 = scmp.ne.s32.totalorder %s50, %s52
      %p56 = scmp.eq.s32.totalorder %s16, 0
      %p57 = por %p55, %p56
      %p58 = scmp.ne.s32.totalorder %s50, %s52
      %p59 = scmp.eq.s32.totalorder %s21, 1
      %p60 = por %p58, %p59
      %p61 = scmp.ne.s32.totalorder %s52, %s53
      %p62 = scmp.eq.s32.totalorder %s21, 0
      %p63 = por %p61, %p62
      %p64 = scmp.ne.s32.totalorder %s52, %s53
      %p65 = scmp.eq.s32.totalorder %s22, 1
      %p66 = por %p64, %p65
      %p68 = scmp.ne.s32.totalorder %s53, %s67
      %p69 = scmp.eq.s32.totalorder %s22, 0
      %p70 = por %p68, %p69
      %s72 = sadd.s32 %s71, 1
      %p75 = scmp.eq.s32.totalorder %s16, 1
      %p76 = scmp.ne.s32.totalorder %s71, %s73
      %p77 = scmp.eq.s32.totalorder %s16, 0
      %p78 = por %p76, %p77
      %p79 = scmp.ne.s32.totalorder %s71, %s73
      %p80 = scmp.eq.s32.totalorder %s21, 1
      %p81 = por %p79, %p80
      %p82 = scmp.ne.s32.totalorder %s73, %s74
      %p83 = scmp.eq.s32.totalorder %s21, 0
      %p84 = por %p82, %p83
      %p85 = scmp.ne.s32.totalorder %s73, %s74
      %p86 = scmp.eq.s32.totalorder %s22, 1
      %p87 = por %p85, %p86
      %p89 = scmp.ne.s32.totalorder %s74, %s88
      %p90 = scmp.eq.s32.totalorder %s22, 0
      %p91 = por %p89, %p90
      %s93 = sadd.s32 %s92, 1
      %p96 = scmp.eq.s32.totalorder %s16, 1
      %p97 = scmp.ne.s32.totalorder %s92, %s94
      %p98 = scmp.eq.s32.totalorder %s16, 0
      %p99 = por %p97, %p98
      %p100 = scmp.ne.s32.totalorder %s92, %s94
      %p101 = scmp.eq.s32.totalorder %s21, 1
      %p102 = por %p100, %p101
      %p103 = scmp.ne.s32.totalorder %s94, %s95
      %p104 = scmp.eq.s32.totalorder %s21, 0
      %p105 = por %p103, %p104
      %p106 = scmp.ne.s32.totalorder %s94, %s95
      %p107 = scmp.eq.s32.totalorder %s22, 1
      %p108 = por %p106, %p107
      %p110 = scmp.ne.s32.totalorder %s95, %s109
      %p111 = scmp.eq.s32.totalorder %s22, 0
      %p112 = por %p110, %p111
      %s114 = sadd.s32 %s113, 1
      %p117 = scmp.eq.s32.totalorder %s16, 1
      %p118 = scmp.ne.s32.totalorder %s113, %s115
      %p119 = scmp.eq.s32.totalorder %s16, 0
      %p120 = por %p118, %p119
      %p121 = scmp.ne.s32.totalorder %s113, %s115
      %p122 = scmp.eq.s32.totalorder %s21, 1
      %p123 = por %p121, %p122
      %p124 = scmp.ne.s32.totalorder %s115, %s116
      %p125 = scmp.eq.s32.totalorder %s21, 0
      %p126 = por %p124, %p125
      %p127 = scmp.ne.s32.totalorder %s115, %s116
      %p128 = scmp.eq.s32.totalorder %s22, 1
      %p129 = por %p127, %p128
      %p131 = scmp.ne.s32.totalorder %s116, %s130
      %p132 = scmp.eq.s32.totalorder %s22, 0
      %p133 = por %p131, %p132
      %s135 = sadd.s32 %s134, 1
      %p138 = scmp.eq.s32.totalorder %s16, 1
      %p139 = scmp.ne.s32.totalorder %s134, %s136
      %p140 = scmp.eq.s32.totalorder %s16, 0
      %p141 = por %p139, %p140
      %p142 = scmp.ne.s32.totalorder %s134, %s136
      %p143 = scmp.eq.s32.totalorder %s21, 1
      %p144 = por %p142, %p143
      %p145 = scmp.ne.s32.totalorder %s136, %s137
      %p146 = scmp.eq.s32.totalorder %s21, 0
      %p147 = por %p145, %p146
      %p148 = scmp.ne.s32.totalorder %s136, %s137
      %p149 = scmp.eq.s32.totalorder %s22, 1
      %p150 = por %p148, %p149
      %p152 = scmp.ne.s32.totalorder %s137, %s151
      %p153 = scmp.eq.s32.totalorder %s22, 0
      %p154 = por %p152, %p153
      %s156 = sadd.s32 %s155, 1
      %p159 = scmp.eq.s32.totalorder %s16, 1
      %p160 = scmp.ne.s32.totalorder %s155, %s157
      %p161 = scmp.eq.s32.totalorder %s16, 0
      %p162 = por %p160, %p161
      %p163 = scmp.ne.s32.totalorder %s155, %s157
      %p164 = scmp.eq.s32.totalorder %s21, 1
      %p165 = por %p163, %p164
      %p166 = scmp.ne.s32.totalorder %s157, %s158
      %p167 = scmp.eq.s32.totalorder %s21, 0
      %p168 = por %p166, %p167
      %p169 = scmp.ne.s32.totalorder %s157, %s158
      %p170 = scmp.eq.s32.totalorder %s22, 1
      %p171 = por %p169, %p170
      %p173 = scmp.ne.s32.totalorder %s158, %s172
      %p174 = scmp.eq.s32.totalorder %s22, 0
      %p175 = por %p173, %p174
      %s176 = ssub.s32 %s16, %s23
      %p177 = scmp.eq.s32.totalorder %s176, 0
      %s179 = sadd.s32 %s178, 1
      %s180 = scalar_select %p177, %s178, %s179
      %p183 = pneg %p177
      %p184 = scmp.eq.s32.totalorder %s16, 1
      %p185 = por %p183, %p184
      %p186 = scmp.ne.s32.totalorder %s178, %s181
      %p187 = scmp.eq.s32.totalorder %s16, 0
      %p188 = por %p186, %p187
      %p189 = scmp.ne.s32.totalorder %s178, %s181
      %p190 = scmp.eq.s32.totalorder %s21, 1
      %p191 = por %p189, %p190
      %p192 = scmp.ne.s32.totalorder %s181, %s182
      %p193 = scmp.eq.s32.totalorder %s21, 0
      %p194 = por %p192, %p193
      %p195 = scmp.ne.s32.totalorder %s181, %s182
      %p196 = scmp.eq.s32.totalorder %s22, 1
      %p197 = por %p195, %p196
      %p199 = scmp.ne.s32.totalorder %s182, %s198
      %p200 = scmp.eq.s32.totalorder %s22, 0
      %p201 = por %p199, %p200
      %p202 = scmp.le.s32.totalorder 1, %s16
      %p203 = scmp.lt.s32.totalorder %s16, 3
      %p204 = pnand %p202, %p203
      %p205 = pneg %p204
      // Predicated region
      $region9: #{tpu_custom_call.1} parent=5 // pred_check
        _
      $region10: #{tpu_custom_call.1} parent=5 // pred_check_branch
        %207 = sbr.rel (%p204) target = $region12
      $region11: #{tpu_custom_call.1} parent=5 // pred_region
        %s208 = ssub.s32 %s16, 1
        // Predicated region
        $region13: #{tpu_custom_call.1} parent=11 // pred_check
          %p209 = pneg %p63
        $region14: #{tpu_custom_call.1} parent=11 // pred_check_branch
          %211 = sbr.rel (%p209) target = $region16
        $region15: #{tpu_custom_call.1} parent=11 // pred_region
          _
        $region16: #{tpu_custom_call.1} parent=11 // pred_fallthru
          _
        // Predicated region
        $region17: #{tpu_custom_call.1} parent=11 // pred_check
          %p212 = pneg %p84
        $region18: #{tpu_custom_call.1} parent=11 // pred_check_branch
          %214 = sbr.rel (%p212) target = $region20
        $region19: #{tpu_custom_call.1} parent=11 // pred_region
          _
        $region20: #{tpu_custom_call.1} parent=11 // pred_fallthru
          _
        // Predicated region
        $region21: #{tpu_custom_call.1} parent=11 // pred_check
          %p215 = pneg %p105
        $region22: #{tpu_custom_call.1} parent=11 // pred_check_branch
          %217 = sbr.rel (%p215) target = $region24
        $region23: #{tpu_custom_call.1} parent=11 // pred_region
          _
        $region24: #{tpu_custom_call.1} parent=11 // pred_fallthru
          _
        // Predicated region
        $region25: #{tpu_custom_call.1} parent=11 // pred_check
          %p218 = pneg %p126
        $region26: #{tpu_custom_call.1} parent=11 // pred_check_branch
          %220 = sbr.rel (%p218) target = $region28
        $region27: #{tpu_custom_call.1} parent=11 // pred_region
          _
        $region28: #{tpu_custom_call.1} parent=11 // pred_fallthru
          _
        // Predicated region
        $region29: #{tpu_custom_call.1} parent=11 // pred_check
          %p221 = pneg %p147
        $region30: #{tpu_custom_call.1} parent=11 // pred_check_branch
          %223 = sbr.rel (%p221) target = $region32
        $region31: #{tpu_custom_call.1} parent=11 // pred_region
          _
        $region32: #{tpu_custom_call.1} parent=11 // pred_fallthru
          _
        // Predicated region
        $region33: #{tpu_custom_call.1} parent=11 // pred_check
          %p224 = pneg %p168
        $region34: #{tpu_custom_call.1} parent=11 // pred_check_branch
          %226 = sbr.rel (%p224) target = $region36
        $region35: #{tpu_custom_call.1} parent=11 // pred_region
          _
        $region36: #{tpu_custom_call.1} parent=11 // pred_fallthru
          _
      $region12: #{tpu_custom_call.1} parent=5 // pred_fallthru
        _
      %p227 = scmp.lt.s32.totalorder %s16, 2
      // Predicated region
      $region37: #{tpu_custom_call.1} parent=5 // pred_check
        %p228 = pneg %p227
      $region38: #{tpu_custom_call.1} parent=5 // pred_check_branch
        %230 = sbr.rel (%p228) target = $region40
      $region39: #{tpu_custom_call.1} parent=5 // pred_region
        // Predicated region
        $region41: #{tpu_custom_call.1} parent=39 // pred_check
          %p231 = pneg %p36
        $region42: #{tpu_custom_call.1} parent=39 // pred_check_branch
          %233 = sbr.rel (%p231) target = $region44
        $region43: #{tpu_custom_call.1} parent=39 // pred_region
          %s234 = smul.u32 4, %s16
          %p235 = scmp.lt.s32.totalorder %s234, 7
          %s236 = scalar_select %p235, %s234, 7
          %s237 = smul.addr %s236, 2
          %s238 = scalar_lea.vmem %s0, %s237
          %s239 = smul.u32 4, %s16
        $region44: #{tpu_custom_call.1} parent=39 // pred_fallthru
          _
      $region40: #{tpu_custom_call.1} parent=5 // pred_fallthru
        _
      %p240 = scmp.le.s32.totalorder 1, %s16
      %p241 = scmp.lt.s32.totalorder %s16, 3
      %p242 = pnand %p240, %p241
      %p243 = pneg %p242
      // Predicated region
      $region45: #{tpu_custom_call.1} parent=5 // pred_check
        _
      $region46: #{tpu_custom_call.1} parent=5 // pred_check_branch
        %245 = sbr.rel (%p242) target = $region48
      $region47: #{tpu_custom_call.1} parent=5 // pred_region
        %s246 = ssub.s32 %s16, 1
        %s247 = smul.u32 4, %s21
        %p248 = scmp.lt.s32.totalorder %s247, 7
        %s249 = scalar_select %p248, %s247, 7
        %s250 = smul.addr %s249, 2
        %s251 = scalar_lea.vmem %s0, %s250
        %p252 = pneg %p42
        %p253 = pneg %p39
        %p254 = pneg %p63
        %p255 = pneg %p60
        %p256 = pneg %p84
        %p257 = pneg %p81
        %p258 = pneg %p105
        %p259 = pneg %p102
        %p260 = pneg %p126
        %p261 = pneg %p123
        %p262 = pneg %p147
        %p263 = pneg %p144
        %p264 = pneg %p168
        %p265 = pneg %p165
        %p266 = pneg %p194
        %p267 = pneg %p191
        %s268 = sand.u32 %s181, 1
        %s269 = scalar_lea.sflag [#allocation3], %s268
        %s270 = sand.u32 %s181, 1
        %s271 = smul.addr %s270, 8
        %s272 = scalar_lea.vmem [#allocation2], %s271
        %s273 = smul.u32 4, %s21
        %p274 = scmp.lt.s32.totalorder %s273, 7
        %s275 = scalar_select %p274, %s273, 7
        %s276 = smul.addr %s275, 2
        %s277 = scalar_lea.vmem %s0, %s276
        %s278 = smul.u32 4, %s21
        %s279 = smul.u32 4, %s21
        %v280 = vld [vmem:[%s277] sm:$0xff]
        %v281 = vld [vmem:[%s2] sm:$0xff]
        %v282 = vld [vmem:[%s2 + $0x8] sm:$0xff]
        %284 = vset.pattern.permute.xlu0 0
        %285 = vperm.xlu0 %284, %v281
        %v286 = vpop.permute.xlu0 %285
        %289 = vset.pattern.permute.xlu0 0
        %290 = vperm.xlu0 %289, %v282
        %v291 = vpop.permute.xlu0 %290
        %v293 = vld [vmem:[%s1] sm:$0xff]
        %v294 = vld [vmem:[%s1 + $0x8] sm:$0xff]
        %296 = vset.pattern.permute.xlu0 0
        %297 = vperm.xlu0 %296, %v293
        %v298 = vpop.permute.xlu0 %297
        %301 = vset.pattern.permute.xlu0 0
        %302 = vperm.xlu0 %301, %v294
        %v303 = vpop.permute.xlu0 %302
        %v306 = vlaneseq
        %v307 = vshrl.u32 %v306, 7
        %v308 = vsub.s32 0, %v307
        %v309 = vrot.slane %v280, %v308
        %v310 = vlaneseq
        %v311 = vshrl.u32 %v310, 7
        %v312 = vsub.s32 2, %v311
        %v313 = vrot.slane %v280, %v312
        %v314 = vlaneseq
        %v315 = vshrl.u32 %v314, 7
        %v316 = vsub.s32 4, %v315
        %v317 = vrot.slane %v280, %v316
        %v318 = vlaneseq
        %v319 = vshrl.u32 %v318, 7
        %v320 = vsub.s32 6, %v319
        %v321 = vrot.slane %v280, %v320
        %v326 = vlaneseq
        %v327 = vshrl.u32 %v326, 7
        %v328 = vsub.s32 0, %v327
        %v329 = vrot.slane %v309, %v328
        %v330 = vlaneseq
        %v331 = vshrl.u32 %v330, 7
        %v332 = vsub.s32 0, %v331
        %v333 = vrot.slane %v313, %v332
        %v334 = vlaneseq
        %v335 = vshrl.u32 %v334, 7
        %v336 = vsub.s32 0, %v335
        %v337 = vrot.slane %v317, %v336
        %v338 = vlaneseq
        %v339 = vshrl.u32 %v338, 7
        %v340 = vsub.s32 0, %v339
        %v341 = vrot.slane %v321, %v340
        %v342 = vmul.f32 %v298, %v329
        %v343 = vmul.f32 %v298, %v333
        %v344 = vmul.f32 %v298, %v337
        %v345 = vmul.f32 %v298, %v341
        %v346 = vmul.f32 %v303, %v329
        %v347 = vmul.f32 %v303, %v333
        %v348 = vmul.f32 %v303, %v337
        %v349 = vmul.f32 %v303, %v341
        %v350 = vadd.f32 %v286, %v342
        %v351 = vadd.f32 %v286, %v343
        %v352 = vadd.f32 %v286, %v344
        %v353 = vadd.f32 %v286, %v345
        %v354 = vadd.f32 %v291, %v346
        %v355 = vadd.f32 %v291, %v347
        %v356 = vadd.f32 %v291, %v348
        %v357 = vadd.f32 %v291, %v349
        %s358 = scalar_lea.vmem %s1, 16
        %v359 = vld [vmem:[%s358] sm:$0xff]
        %v360 = vld [vmem:[%s358 + $0x8] sm:$0xff]
        %362 = vset.pattern.permute.xlu0 0
        %363 = vperm.xlu0 %362, %v359
        %v364 = vpop.permute.xlu0 %363
        %367 = vset.pattern.permute.xlu0 0
        %368 = vperm.xlu0 %367, %v360
        %v369 = vpop.permute.xlu0 %368
        %v371 = vlaneseq
        %v372 = vshrl.u32 %v371, 7
        %v373 = vsub.s32 1, %v372
        %v374 = vrot.slane %v280, %v373
        %v375 = vlaneseq
        %v376 = vshrl.u32 %v375, 7
        %v377 = vsub.s32 3, %v376
        %v378 = vrot.slane %v280, %v377
        %v379 = vlaneseq
        %v380 = vshrl.u32 %v379, 7
        %v381 = vsub.s32 5, %v380
        %v382 = vrot.slane %v280, %v381
        %v383 = vlaneseq
        %v384 = vshrl.u32 %v383, 7
        %v385 = vsub.s32 7, %v384
        %v386 = vrot.slane %v280, %v385
        %v391 = vlaneseq
        %v392 = vshrl.u32 %v391, 7
        %v393 = vsub.s32 1, %v392
        %v394 = vrot.slane %v374, %v393
        %v395 = vlaneseq
        %v396 = vshrl.u32 %v395, 7
        %v397 = vsub.s32 1, %v396
        %v398 = vrot.slane %v378, %v397
        %v399 = vlaneseq
        %v400 = vshrl.u32 %v399, 7
        %v401 = vsub.s32 1, %v400
        %v402 = vrot.slane %v382, %v401
        %v403 = vlaneseq
        %v404 = vshrl.u32 %v403, 7
        %v405 = vsub.s32 1, %v404
        %v406 = vrot.slane %v386, %v405
        %v407 = vmul.f32 %v364, %v394
        %v408 = vmul.f32 %v364, %v398
        %v409 = vmul.f32 %v364, %v402
        %v410 = vmul.f32 %v364, %v406
        %v411 = vmul.f32 %v369, %v394
        %v412 = vmul.f32 %v369, %v398
        %v413 = vmul.f32 %v369, %v402
        %v414 = vmul.f32 %v369, %v406
        %v415 = vadd.f32 %v350, %v407
        %v416 = vadd.f32 %v351, %v408
        %v417 = vadd.f32 %v352, %v409
        %v418 = vadd.f32 %v353, %v410
        %v419 = vadd.f32 %v354, %v411
        %v420 = vadd.f32 %v355, %v412
        %v421 = vadd.f32 %v356, %v413
        %v422 = vadd.f32 %v357, %v414
        %v423 = vmax.f32 %v415, 0.0
        %v424 = vmax.f32 %v416, 0.0
        %v425 = vmax.f32 %v417, 0.0
        %v426 = vmax.f32 %v418, 0.0
        %v427 = vmax.f32 %v419, 0.0
        %v428 = vmax.f32 %v420, 0.0
        %v429 = vmax.f32 %v421, 0.0
        %v430 = vmax.f32 %v422, 0.0
        %v431 = vld [vmem:[%s4] sm:$0xff]
        %v432 = vld [vmem:[%s4 + $0x8] sm:$0xff]
        %v433 = vld [vmem:[%s4 + $0x10] sm:$0xff]
        %v434 = vld [vmem:[%s4 + $0x18] sm:$0xff]
        %436 = vset.pattern.permute.xlu0 0
        %437 = vperm.xlu0 %436, %v431
        %v438 = vpop.permute.xlu0 %437
        %441 = vset.pattern.permute.xlu0 0
        %442 = vperm.xlu0 %441, %v432
        %v443 = vpop.permute.xlu0 %442
        %446 = vset.pattern.permute.xlu0 0
        %447 = vperm.xlu0 %446, %v433
        %v448 = vpop.permute.xlu0 %447
        %451 = vset.pattern.permute.xlu0 0
        %452 = vperm.xlu0 %451, %v434
        %v453 = vpop.permute.xlu0 %452
        %v455 = vld [vmem:[%s3] sm:$0xff]
        %v456 = vld [vmem:[%s3 + $0x8] sm:$0xff]
        %v457 = vld [vmem:[%s3 + $0x10] sm:$0xff]
        %v458 = vld [vmem:[%s3 + $0x18] sm:$0xff]
        %460 = vset.pattern.permute.xlu0 0
        %461 = vperm.xlu0 %460, %v455
        %v462 = vpop.permute.xlu0 %461
        %465 = vset.pattern.permute.xlu0 0
        %466 = vperm.xlu0 %465, %v456
        %v467 = vpop.permute.xlu0 %466
        %470 = vset.pattern.permute.xlu0 0
        %471 = vperm.xlu0 %470, %v457
        %v472 = vpop.permute.xlu0 %471
        %475 = vset.pattern.permute.xlu0 0
        %476 = vperm.xlu0 %475, %v458
        %v477 = vpop.permute.xlu0 %476
        %v479 = vlaneseq
        %v480 = vshrl.u32 %v479, 7
        %v481 = vsub.s32 0, %v480
        %v482 = vrot.slane %v423, %v481
        %v483 = vlaneseq
        %v484 = vshrl.u32 %v483, 7
        %v485 = vsub.s32 0, %v484
        %v486 = vrot.slane %v424, %v485
        %v487 = vlaneseq
        %v488 = vshrl.u32 %v487, 7
        %v489 = vsub.s32 0, %v488
        %v490 = vrot.slane %v425, %v489
        %v491 = vlaneseq
        %v492 = vshrl.u32 %v491, 7
        %v493 = vsub.s32 0, %v492
        %v494 = vrot.slane %v426, %v493
        %v495 = vmul.f32 %v462, %v482
        %v496 = vmul.f32 %v462, %v486
        %v497 = vmul.f32 %v462, %v490
        %v498 = vmul.f32 %v462, %v494
        %v499 = vmul.f32 %v467, %v482
        %v500 = vmul.f32 %v467, %v486
        %v501 = vmul.f32 %v467, %v490
        %v502 = vmul.f32 %v467, %v494
        %v503 = vmul.f32 %v472, %v482
        %v504 = vmul.f32 %v472, %v486
        %v505 = vmul.f32 %v472, %v490
        %v506 = vmul.f32 %v472, %v494
        %v507 = vmul.f32 %v477, %v482
        %v508 = vmul.f32 %v477, %v486
        %v509 = vmul.f32 %v477, %v490
        %v510 = vmul.f32 %v477, %v494
        %v511 = vadd.f32 %v438, %v495
        %v512 = vadd.f32 %v438, %v496
        %v513 = vadd.f32 %v438, %v497
        %v514 = vadd.f32 %v438, %v498
        %v515 = vadd.f32 %v443, %v499
        %v516 = vadd.f32 %v443, %v500
        %v517 = vadd.f32 %v443, %v501
        %v518 = vadd.f32 %v443, %v502
        %v519 = vadd.f32 %v448, %v503
        %v520 = vadd.f32 %v448, %v504
        %v521 = vadd.f32 %v448, %v505
        %v522 = vadd.f32 %v448, %v506
        %v523 = vadd.f32 %v453, %v507
        %v524 = vadd.f32 %v453, %v508
        %v525 = vadd.f32 %v453, %v509
        %v526 = vadd.f32 %v453, %v510
        %s527 = scalar_lea.vmem %s3, 32
        %v528 = vld [vmem:[%s527] sm:$0xff]
        %v529 = vld [vmem:[%s527 + $0x8] sm:$0xff]
        %v530 = vld [vmem:[%s527 + $0x10] sm:$0xff]
        %v531 = vld [vmem:[%s527 + $0x18] sm:$0xff]
        %533 = vset.pattern.permute.xlu0 0
        %534 = vperm.xlu0 %533, %v528
        %v535 = vpop.permute.xlu0 %534
        %538 = vset.pattern.permute.xlu0 0
        %539 = vperm.xlu0 %538, %v529
        %v540 = vpop.permute.xlu0 %539
        %543 = vset.pattern.permute.xlu0 0
        %544 = vperm.xlu0 %543, %v530
        %v545 = vpop.permute.xlu0 %544
        %548 = vset.pattern.permute.xlu0 0
        %549 = vperm.xlu0 %548, %v531
        %v550 = vpop.permute.xlu0 %549
        %v552 = vlaneseq
        %v553 = vshrl.u32 %v552, 7
        %v554 = vsub.s32 1, %v553
        %v555 = vrot.slane %v423, %v554
        %v556 = vlaneseq
        %v557 = vshrl.u32 %v556, 7
        %v558 = vsub.s32 1, %v557
        %v559 = vrot.slane %v424, %v558
        %v560 = vlaneseq
        %v561 = vshrl.u32 %v560, 7
        %v562 = vsub.s32 1, %v561
        %v563 = vrot.slane %v425, %v562
        %v564 = vlaneseq
        %v565 = vshrl.u32 %v564, 7
        %v566 = vsub.s32 1, %v565
        %v567 = vrot.slane %v426, %v566
        %v568 = vmul.f32 %v535, %v555
        %v569 = vmul.f32 %v535, %v559
        %v570 = vmul.f32 %v535, %v563
        %v571 = vmul.f32 %v535, %v567
        %v572 = vmul.f32 %v540, %v555
        %v573 = vmul.f32 %v540, %v559
        %v574 = vmul.f32 %v540, %v563
        %v575 = vmul.f32 %v540, %v567
        %v576 = vmul.f32 %v545, %v555
        %v577 = vmul.f32 %v545, %v559
        %v578 = vmul.f32 %v545, %v563
        %v579 = vmul.f32 %v545, %v567
        %v580 = vmul.f32 %v550, %v555
        %v581 = vmul.f32 %v550, %v559
        %v582 = vmul.f32 %v550, %v563
        %v583 = vmul.f32 %v550, %v567
        %v584 = vadd.f32 %v511, %v568
        %v585 = vadd.f32 %v512, %v569
        %v586 = vadd.f32 %v513, %v570
        %v587 = vadd.f32 %v514, %v571
        %v588 = vadd.f32 %v515, %v572
        %v589 = vadd.f32 %v516, %v573
        %v590 = vadd.f32 %v517, %v574
        %v591 = vadd.f32 %v518, %v575
        %v592 = vadd.f32 %v519, %v576
        %v593 = vadd.f32 %v520, %v577
        %v594 = vadd.f32 %v521, %v578
        %v595 = vadd.f32 %v522, %v579
        %v596 = vadd.f32 %v523, %v580
        %v597 = vadd.f32 %v524, %v581
        %v598 = vadd.f32 %v525, %v582
        %v599 = vadd.f32 %v526, %v583
        %s600 = scalar_lea.vmem %s3, 64
        %v601 = vld [vmem:[%s600] sm:$0xff]
        %v602 = vld [vmem:[%s600 + $0x8] sm:$0xff]
        %v603 = vld [vmem:[%s600 + $0x10] sm:$0xff]
        %v604 = vld [vmem:[%s600 + $0x18] sm:$0xff]
        %606 = vset.pattern.permute.xlu0 0
        %607 = vperm.xlu0 %606, %v601
        %v608 = vpop.permute.xlu0 %607
        %611 = vset.pattern.permute.xlu0 0
        %612 = vperm.xlu0 %611, %v602
        %v613 = vpop.permute.xlu0 %612
        %616 = vset.pattern.permute.xlu0 0
        %617 = vperm.xlu0 %616, %v603
        %v618 = vpop.permute.xlu0 %617
        %621 = vset.pattern.permute.xlu0 0
        %622 = vperm.xlu0 %621, %v604
        %v623 = vpop.permute.xlu0 %622
        %v625 = vlaneseq
        %v626 = vshrl.u32 %v625, 7
        %v627 = vsub.s32 2, %v626
        %v628 = vrot.slane %v423, %v627
        %v629 = vlaneseq
        %v630 = vshrl.u32 %v629, 7
        %v631 = vsub.s32 2, %v630
        %v632 = vrot.slane %v424, %v631
        %v633 = vlaneseq
        %v634 = vshrl.u32 %v633, 7
        %v635 = vsub.s32 2, %v634
        %v636 = vrot.slane %v425, %v635
        %v637 = vlaneseq
        %v638 = vshrl.u32 %v637, 7
        %v639 = vsub.s32 2, %v638
        %v640 = vrot.slane %v426, %v639
        %v641 = vmul.f32 %v608, %v628
        %v642 = vmul.f32 %v608, %v632
        %v643 = vmul.f32 %v608, %v636
        %v644 = vmul.f32 %v608, %v640
        %v645 = vmul.f32 %v613, %v628
        %v646 = vmul.f32 %v613, %v632
        %v647 = vmul.f32 %v613, %v636
        %v648 = vmul.f32 %v613, %v640
        %v649 = vmul.f32 %v618, %v628
        %v650 = vmul.f32 %v618, %v632
        %v651 = vmul.f32 %v618, %v636
        %v652 = vmul.f32 %v618, %v640
        %v653 = vmul.f32 %v623, %v628
        %v654 = vmul.f32 %v623, %v632
        %v655 = vmul.f32 %v623, %v636
        %v656 = vmul.f32 %v623, %v640
        %v657 = vadd.f32 %v584, %v641
        %v658 = vadd.f32 %v585, %v642
        %v659 = vadd.f32 %v586, %v643
        %v660 = vadd.f32 %v587, %v644
        %v661 = vadd.f32 %v588, %v645
        %v662 = vadd.f32 %v589, %v646
        %v663 = vadd.f32 %v590, %v647
        %v664 = vadd.f32 %v591, %v648
        %v665 = vadd.f32 %v592, %v649
        %v666 = vadd.f32 %v593, %v650
        %v667 = vadd.f32 %v594, %v651
        %v668 = vadd.f32 %v595, %v652
        %v669 = vadd.f32 %v596, %v653
        %v670 = vadd.f32 %v597, %v654
        %v671 = vadd.f32 %v598, %v655
        %v672 = vadd.f32 %v599, %v656
        %s673 = scalar_lea.vmem %s3, 96
        %v674 = vld [vmem:[%s673] sm:$0xff]
        %v675 = vld [vmem:[%s673 + $0x8] sm:$0xff]
        %v676 = vld [vmem:[%s673 + $0x10] sm:$0xff]
        %v677 = vld [vmem:[%s673 + $0x18] sm:$0xff]
        %679 = vset.pattern.permute.xlu0 0
        %680 = vperm.xlu0 %679, %v674
        %v681 = vpop.permute.xlu0 %680
        %684 = vset.pattern.permute.xlu0 0
        %685 = vperm.xlu0 %684, %v675
        %v686 = vpop.permute.xlu0 %685
        %689 = vset.pattern.permute.xlu0 0
        %690 = vperm.xlu0 %689, %v676
        %v691 = vpop.permute.xlu0 %690
        %694 = vset.pattern.permute.xlu0 0
        %695 = vperm.xlu0 %694, %v677
        %v696 = vpop.permute.xlu0 %695
        %v698 = vlaneseq
        %v699 = vshrl.u32 %v698, 7
        %v700 = vsub.s32 3, %v699
        %v701 = vrot.slane %v423, %v700
        %v702 = vlaneseq
        %v703 = vshrl.u32 %v702, 7
        %v704 = vsub.s32 3, %v703
        %v705 = vrot.slane %v424, %v704
        %v706 = vlaneseq
        %v707 = vshrl.u32 %v706, 7
        %v708 = vsub.s32 3, %v707
        %v709 = vrot.slane %v425, %v708
        %v710 = vlaneseq
        %v711 = vshrl.u32 %v710, 7
        %v712 = vsub.s32 3, %v711
        %v713 = vrot.slane %v426, %v712
        %v714 = vmul.f32 %v681, %v701
        %v715 = vmul.f32 %v681, %v705
        %v716 = vmul.f32 %v681, %v709
        %v717 = vmul.f32 %v681, %v713
        %v718 = vmul.f32 %v686, %v701
        %v719 = vmul.f32 %v686, %v705
        %v720 = vmul.f32 %v686, %v709
        %v721 = vmul.f32 %v686, %v713
        %v722 = vmul.f32 %v691, %v701
        %v723 = vmul.f32 %v691, %v705
        %v724 = vmul.f32 %v691, %v709
        %v725 = vmul.f32 %v691, %v713
        %v726 = vmul.f32 %v696, %v701
        %v727 = vmul.f32 %v696, %v705
        %v728 = vmul.f32 %v696, %v709
        %v729 = vmul.f32 %v696, %v713
        %v730 = vadd.f32 %v657, %v714
        %v731 = vadd.f32 %v658, %v715
        %v732 = vadd.f32 %v659, %v716
        %v733 = vadd.f32 %v660, %v717
        %v734 = vadd.f32 %v661, %v718
        %v735 = vadd.f32 %v662, %v719
        %v736 = vadd.f32 %v663, %v720
        %v737 = vadd.f32 %v664, %v721
        %v738 = vadd.f32 %v665, %v722
        %v739 = vadd.f32 %v666, %v723
        %v740 = vadd.f32 %v667, %v724
        %v741 = vadd.f32 %v668, %v725
        %v742 = vadd.f32 %v669, %v726
        %v743 = vadd.f32 %v670, %v727
        %v744 = vadd.f32 %v671, %v728
        %v745 = vadd.f32 %v672, %v729
        %s746 = scalar_lea.vmem %s3, 128
        %v747 = vld [vmem:[%s746] sm:$0xff]
        %v748 = vld [vmem:[%s746 + $0x8] sm:$0xff]
        %v749 = vld [vmem:[%s746 + $0x10] sm:$0xff]
        %v750 = vld [vmem:[%s746 + $0x18] sm:$0xff]
        %752 = vset.pattern.permute.xlu0 0
        %753 = vperm.xlu0 %752, %v747
        %v754 = vpop.permute.xlu0 %753
        %757 = vset.pattern.permute.xlu0 0
        %758 = vperm.xlu0 %757, %v748
        %v759 = vpop.permute.xlu0 %758
        %762 = vset.pattern.permute.xlu0 0
        %763 = vperm.xlu0 %762, %v749
        %v764 = vpop.permute.xlu0 %763
        %767 = vset.pattern.permute.xlu0 0
        %768 = vperm.xlu0 %767, %v750
        %v769 = vpop.permute.xlu0 %768
        %v771 = vlaneseq
        %v772 = vshrl.u32 %v771, 7
        %v773 = vsub.s32 4, %v772
        %v774 = vrot.slane %v423, %v773
        %v775 = vlaneseq
        %v776 = vshrl.u32 %v775, 7
        %v777 = vsub.s32 4, %v776
        %v778 = vrot.slane %v424, %v777
        %v779 = vlaneseq
        %v780 = vshrl.u32 %v779, 7
        %v781 = vsub.s32 4, %v780
        %v782 = vrot.slane %v425, %v781
        %v783 = vlaneseq
        %v784 = vshrl.u32 %v783, 7
        %v785 = vsub.s32 4, %v784
        %v786 = vrot.slane %v426, %v785
        %v787 = vmul.f32 %v754, %v774
        %v788 = vmul.f32 %v754, %v778
        %v789 = vmul.f32 %v754, %v782
        %v790 = vmul.f32 %v754, %v786
        %v791 = vmul.f32 %v759, %v774
        %v792 = vmul.f32 %v759, %v778
        %v793 = vmul.f32 %v759, %v782
        %v794 = vmul.f32 %v759, %v786
        %v795 = vmul.f32 %v764, %v774
        %v796 = vmul.f32 %v764, %v778
        %v797 = vmul.f32 %v764, %v782
        %v798 = vmul.f32 %v764, %v786
        %v799 = vmul.f32 %v769, %v774
        %v800 = vmul.f32 %v769, %v778
        %v801 = vmul.f32 %v769, %v782
        %v802 = vmul.f32 %v769, %v786
        %v803 = vadd.f32 %v730, %v787
        %v804 = vadd.f32 %v731, %v788
        %v805 = vadd.f32 %v732, %v789
        %v806 = vadd.f32 %v733, %v790
        %v807 = vadd.f32 %v734, %v791
        %v808 = vadd.f32 %v735, %v792
        %v809 = vadd.f32 %v736, %v793
        %v810 = vadd.f32 %v737, %v794
        %v811 = vadd.f32 %v738, %v795
        %v812 = vadd.f32 %v739, %v796
        %v813 = vadd.f32 %v740, %v797
        %v814 = vadd.f32 %v741, %v798
        %v815 = vadd.f32 %v742, %v799
        %v816 = vadd.f32 %v743, %v800
        %v817 = vadd.f32 %v744, %v801
        %v818 = vadd.f32 %v745, %v802
        %s819 = scalar_lea.vmem %s3, 160
        %v820 = vld [vmem:[%s819] sm:$0xff]
        %v821 = vld [vmem:[%s819 + $0x8] sm:$0xff]
        %v822 = vld [vmem:[%s819 + $0x10] sm:$0xff]
        %v823 = vld [vmem:[%s819 + $0x18] sm:$0xff]
        %825 = vset.pattern.permute.xlu0 0
        %826 = vperm.xlu0 %825, %v820
        %v827 = vpop.permute.xlu0 %826
        %830 = vset.pattern.permute.xlu0 0
        %831 = vperm.xlu0 %830, %v821
        %v832 = vpop.permute.xlu0 %831
        %835 = vset.pattern.permute.xlu0 0
        %836 = vperm.xlu0 %835, %v822
        %v837 = vpop.permute.xlu0 %836
        %840 = vset.pattern.permute.xlu0 0
        %841 = vperm.xlu0 %840, %v823
        %v842 = vpop.permute.xlu0 %841
        %v844 = vlaneseq
        %v845 = vshrl.u32 %v844, 7
        %v846 = vsub.s32 5, %v845
        %v847 = vrot.slane %v423, %v846
        %v848 = vlaneseq
        %v849 = vshrl.u32 %v848, 7
        %v850 = vsub.s32 5, %v849
        %v851 = vrot.slane %v424, %v850
        %v852 = vlaneseq
        %v853 = vshrl.u32 %v852, 7
        %v854 = vsub.s32 5, %v853
        %v855 = vrot.slane %v425, %v854
        %v856 = vlaneseq
        %v857 = vshrl.u32 %v856, 7
        %v858 = vsub.s32 5, %v857
        %v859 = vrot.slane %v426, %v858
        %v860 = vmul.f32 %v827, %v847
        %v861 = vmul.f32 %v827, %v851
        %v862 = vmul.f32 %v827, %v855
        %v863 = vmul.f32 %v827, %v859
        %v864 = vmul.f32 %v832, %v847
        %v865 = vmul.f32 %v832, %v851
        %v866 = vmul.f32 %v832, %v855
        %v867 = vmul.f32 %v832, %v859
        %v868 = vmul.f32 %v837, %v847
        %v869 = vmul.f32 %v837, %v851
        %v870 = vmul.f32 %v837, %v855
        %v871 = vmul.f32 %v837, %v859
        %v872 = vmul.f32 %v842, %v847
        %v873 = vmul.f32 %v842, %v851
        %v874 = vmul.f32 %v842, %v855
        %v875 = vmul.f32 %v842, %v859
        %v876 = vadd.f32 %v803, %v860
        %v877 = vadd.f32 %v804, %v861
        %v878 = vadd.f32 %v805, %v862
        %v879 = vadd.f32 %v806, %v863
        %v880 = vadd.f32 %v807, %v864
        %v881 = vadd.f32 %v808, %v865
        %v882 = vadd.f32 %v809, %v866
        %v883 = vadd.f32 %v810, %v867
        %v884 = vadd.f32 %v811, %v868
        %v885 = vadd.f32 %v812, %v869
        %v886 = vadd.f32 %v813, %v870
        %v887 = vadd.f32 %v814, %v871
        %v888 = vadd.f32 %v815, %v872
        %v889 = vadd.f32 %v816, %v873
        %v890 = vadd.f32 %v817, %v874
        %v891 = vadd.f32 %v818, %v875
        %s892 = scalar_lea.vmem %s3, 192
        %v893 = vld [vmem:[%s892] sm:$0xff]
        %v894 = vld [vmem:[%s892 + $0x8] sm:$0xff]
        %v895 = vld [vmem:[%s892 + $0x10] sm:$0xff]
        %v896 = vld [vmem:[%s892 + $0x18] sm:$0xff]
        %898 = vset.pattern.permute.xlu0 0
        %899 = vperm.xlu0 %898, %v893
        %v900 = vpop.permute.xlu0 %899
        %903 = vset.pattern.permute.xlu0 0
        %904 = vperm.xlu0 %903, %v894
        %v905 = vpop.permute.xlu0 %904
        %908 = vset.pattern.permute.xlu0 0
        %909 = vperm.xlu0 %908, %v895
        %v910 = vpop.permute.xlu0 %909
        %913 = vset.pattern.permute.xlu0 0
        %914 = vperm.xlu0 %913, %v896
        %v915 = vpop.permute.xlu0 %914
        %v917 = vlaneseq
        %v918 = vshrl.u32 %v917, 7
        %v919 = vsub.s32 6, %v918
        %v920 = vrot.slane %v423, %v919
        %v921 = vlaneseq
        %v922 = vshrl.u32 %v921, 7
        %v923 = vsub.s32 6, %v922
        %v924 = vrot.slane %v424, %v923
        %v925 = vlaneseq
        %v926 = vshrl.u32 %v925, 7
        %v927 = vsub.s32 6, %v926
        %v928 = vrot.slane %v425, %v927
        %v929 = vlaneseq
        %v930 = vshrl.u32 %v929, 7
        %v931 = vsub.s32 6, %v930
        %v932 = vrot.slane %v426, %v931
        %v933 = vmul.f32 %v900, %v920
        %v934 = vmul.f32 %v900, %v924
        %v935 = vmul.f32 %v900, %v928
        %v936 = vmul.f32 %v900, %v932
        %v937 = vmul.f32 %v905, %v920
        %v938 = vmul.f32 %v905, %v924
        %v939 = vmul.f32 %v905, %v928
        %v940 = vmul.f32 %v905, %v932
        %v941 = vmul.f32 %v910, %v920
        %v942 = vmul.f32 %v910, %v924
        %v943 = vmul.f32 %v910, %v928
        %v944 = vmul.f32 %v910, %v932
        %v945 = vmul.f32 %v915, %v920
        %v946 = vmul.f32 %v915, %v924
        %v947 = vmul.f32 %v915, %v928
        %v948 = vmul.f32 %v915, %v932
        %v949 = vadd.f32 %v876, %v933
        %v950 = vadd.f32 %v877, %v934
        %v951 = vadd.f32 %v878, %v935
        %v952 = vadd.f32 %v879, %v936
        %v953 = vadd.f32 %v880, %v937
        %v954 = vadd.f32 %v881, %v938
        %v955 = vadd.f32 %v882, %v939
        %v956 = vadd.f32 %v883, %v940
        %v957 = vadd.f32 %v884, %v941
        %v958 = vadd.f32 %v885, %v942
        %v959 = vadd.f32 %v886, %v943
        %v960 = vadd.f32 %v887, %v944
        %v961 = vadd.f32 %v888, %v945
        %v962 = vadd.f32 %v889, %v946
        %v963 = vadd.f32 %v890, %v947
        %v964 = vadd.f32 %v891, %v948
        %s965 = scalar_lea.vmem %s3, 224
        %v966 = vld [vmem:[%s965] sm:$0xff]
        %v967 = vld [vmem:[%s965 + $0x8] sm:$0xff]
        %v968 = vld [vmem:[%s965 + $0x10] sm:$0xff]
        %v969 = vld [vmem:[%s965 + $0x18] sm:$0xff]
        %971 = vset.pattern.permute.xlu0 0
        %972 = vperm.xlu0 %971, %v966
        %v973 = vpop.permute.xlu0 %972
        %976 = vset.pattern.permute.xlu0 0
        %977 = vperm.xlu0 %976, %v967
        %v978 = vpop.permute.xlu0 %977
        %981 = vset.pattern.permute.xlu0 0
        %982 = vperm.xlu0 %981, %v968
        %v983 = vpop.permute.xlu0 %982
        %986 = vset.pattern.permute.xlu0 0
        %987 = vperm.xlu0 %986, %v969
        %v988 = vpop.permute.xlu0 %987
        %v990 = vlaneseq
        %v991 = vshrl.u32 %v990, 7
        %v992 = vsub.s32 7, %v991
        %v993 = vrot.slane %v423, %v992
        %v994 = vlaneseq
        %v995 = vshrl.u32 %v994, 7
        %v996 = vsub.s32 7, %v995
        %v997 = vrot.slane %v424, %v996
        %v998 = vlaneseq
        %v999 = vshrl.u32 %v998, 7
        %v1000 = vsub.s32 7, %v999
        %v1001 = vrot.slane %v425, %v1000
        %v1002 = vlaneseq
        %v1003 = vshrl.u32 %v1002, 7
        %v1004 = vsub.s32 7, %v1003
        %v1005 = vrot.slane %v426, %v1004
        %v1006 = vmul.f32 %v973, %v993
        %v1007 = vmul.f32 %v973, %v997
        %v1008 = vmul.f32 %v973, %v1001
        %v1009 = vmul.f32 %v973, %v1005
        %v1010 = vmul.f32 %v978, %v993
        %v1011 = vmul.f32 %v978, %v997
        %v1012 = vmul.f32 %v978, %v1001
        %v1013 = vmul.f32 %v978, %v1005
        %v1014 = vmul.f32 %v983, %v993
        %v1015 = vmul.f32 %v983, %v997
        %v1016 = vmul.f32 %v983, %v1001
        %v1017 = vmul.f32 %v983, %v1005
        %v1018 = vmul.f32 %v988, %v993
        %v1019 = vmul.f32 %v988, %v997
        %v1020 = vmul.f32 %v988, %v1001
        %v1021 = vmul.f32 %v988, %v1005
        %v1022 = vadd.f32 %v949, %v1006
        %v1023 = vadd.f32 %v950, %v1007
        %v1024 = vadd.f32 %v951, %v1008
        %v1025 = vadd.f32 %v952, %v1009
        %v1026 = vadd.f32 %v953, %v1010
        %v1027 = vadd.f32 %v954, %v1011
        %v1028 = vadd.f32 %v955, %v1012
        %v1029 = vadd.f32 %v956, %v1013
        %v1030 = vadd.f32 %v957, %v1014
        %v1031 = vadd.f32 %v958, %v1015
        %v1032 = vadd.f32 %v959, %v1016
        %v1033 = vadd.f32 %v960, %v1017
        %v1034 = vadd.f32 %v961, %v1018
        %v1035 = vadd.f32 %v962, %v1019
        %v1036 = vadd.f32 %v963, %v1020
        %v1037 = vadd.f32 %v964, %v1021
        %s1038 = scalar_lea.vmem %s3, 256
        %v1039 = vld [vmem:[%s1038] sm:$0xff]
        %v1040 = vld [vmem:[%s1038 + $0x8] sm:$0xff]
        %v1041 = vld [vmem:[%s1038 + $0x10] sm:$0xff]
        %v1042 = vld [vmem:[%s1038 + $0x18] sm:$0xff]
        %1044 = vset.pattern.permute.xlu0 0
        %1045 = vperm.xlu0 %1044, %v1039
        %v1046 = vpop.permute.xlu0 %1045
        %1049 = vset.pattern.permute.xlu0 0
        %1050 = vperm.xlu0 %1049, %v1040
        %v1051 = vpop.permute.xlu0 %1050
        %1054 = vset.pattern.permute.xlu0 0
        %1055 = vperm.xlu0 %1054, %v1041
        %v1056 = vpop.permute.xlu0 %1055
        %1059 = vset.pattern.permute.xlu0 0
        %1060 = vperm.xlu0 %1059, %v1042
        %v1061 = vpop.permute.xlu0 %1060
        %v1063 = vlaneseq
        %v1064 = vshrl.u32 %v1063, 7
        %v1065 = vsub.s32 0, %v1064
        %v1066 = vrot.slane %v427, %v1065
        %v1067 = vlaneseq
        %v1068 = vshrl.u32 %v1067, 7
        %v1069 = vsub.s32 0, %v1068
        %v1070 = vrot.slane %v428, %v1069
        %v1071 = vlaneseq
        %v1072 = vshrl.u32 %v1071, 7
        %v1073 = vsub.s32 0, %v1072
        %v1074 = vrot.slane %v429, %v1073
        %v1075 = vlaneseq
        %v1076 = vshrl.u32 %v1075, 7
        %v1077 = vsub.s32 0, %v1076
        %v1078 = vrot.slane %v430, %v1077
        %v1079 = vmul.f32 %v1046, %v1066
        %v1080 = vmul.f32 %v1046, %v1070
        %v1081 = vmul.f32 %v1046, %v1074
        %v1082 = vmul.f32 %v1046, %v1078
        %v1083 = vmul.f32 %v1051, %v1066
        %v1084 = vmul.f32 %v1051, %v1070
        %v1085 = vmul.f32 %v1051, %v1074
        %v1086 = vmul.f32 %v1051, %v1078
        %v1087 = vmul.f32 %v1056, %v1066
        %v1088 = vmul.f32 %v1056, %v1070
        %v1089 = vmul.f32 %v1056, %v1074
        %v1090 = vmul.f32 %v1056, %v1078
        %v1091 = vmul.f32 %v1061, %v1066
        %v1092 = vmul.f32 %v1061, %v1070
        %v1093 = vmul.f32 %v1061, %v1074
        %v1094 = vmul.f32 %v1061, %v1078
        %v1095 = vadd.f32 %v1022, %v1079
        %v1096 = vadd.f32 %v1023, %v1080
        %v1097 = vadd.f32 %v1024, %v1081
        %v1098 = vadd.f32 %v1025, %v1082
        %v1099 = vadd.f32 %v1026, %v1083
        %v1100 = vadd.f32 %v1027, %v1084
        %v1101 = vadd.f32 %v1028, %v1085
        %v1102 = vadd.f32 %v1029, %v1086
        %v1103 = vadd.f32 %v1030, %v1087
        %v1104 = vadd.f32 %v1031, %v1088
        %v1105 = vadd.f32 %v1032, %v1089
        %v1106 = vadd.f32 %v1033, %v1090
        %v1107 = vadd.f32 %v1034, %v1091
        %v1108 = vadd.f32 %v1035, %v1092
        %v1109 = vadd.f32 %v1036, %v1093
        %v1110 = vadd.f32 %v1037, %v1094
        %s1111 = scalar_lea.vmem %s3, 288
        %v1112 = vld [vmem:[%s1111] sm:$0xff]
        %v1113 = vld [vmem:[%s1111 + $0x8] sm:$0xff]
        %v1114 = vld [vmem:[%s1111 + $0x10] sm:$0xff]
        %v1115 = vld [vmem:[%s1111 + $0x18] sm:$0xff]
        %1117 = vset.pattern.permute.xlu0 0
        %1118 = vperm.xlu0 %1117, %v1112
        %v1119 = vpop.permute.xlu0 %1118
        %1122 = vset.pattern.permute.xlu0 0
        %1123 = vperm.xlu0 %1122, %v1113
        %v1124 = vpop.permute.xlu0 %1123
        %1127 = vset.pattern.permute.xlu0 0
        %1128 = vperm.xlu0 %1127, %v1114
        %v1129 = vpop.permute.xlu0 %1128
        %1132 = vset.pattern.permute.xlu0 0
        %1133 = vperm.xlu0 %1132, %v1115
        %v1134 = vpop.permute.xlu0 %1133
        %v1136 = vlaneseq
        %v1137 = vshrl.u32 %v1136, 7
        %v1138 = vsub.s32 1, %v1137
        %v1139 = vrot.slane %v427, %v1138
        %v1140 = vlaneseq
        %v1141 = vshrl.u32 %v1140, 7
        %v1142 = vsub.s32 1, %v1141
        %v1143 = vrot.slane %v428, %v1142
        %v1144 = vlaneseq
        %v1145 = vshrl.u32 %v1144, 7
        %v1146 = vsub.s32 1, %v1145
        %v1147 = vrot.slane %v429, %v1146
        %v1148 = vlaneseq
        %v1149 = vshrl.u32 %v1148, 7
        %v1150 = vsub.s32 1, %v1149
        %v1151 = vrot.slane %v430, %v1150
        %v1152 = vmul.f32 %v1119, %v1139
        %v1153 = vmul.f32 %v1119, %v1143
        %v1154 = vmul.f32 %v1119, %v1147
        %v1155 = vmul.f32 %v1119, %v1151
        %v1156 = vmul.f32 %v1124, %v1139
        %v1157 = vmul.f32 %v1124, %v1143
        %v1158 = vmul.f32 %v1124, %v1147
        %v1159 = vmul.f32 %v1124, %v1151
        %v1160 = vmul.f32 %v1129, %v1139
        %v1161 = vmul.f32 %v1129, %v1143
        %v1162 = vmul.f32 %v1129, %v1147
        %v1163 = vmul.f32 %v1129, %v1151
        %v1164 = vmul.f32 %v1134, %v1139
        %v1165 = vmul.f32 %v1134, %v1143
        %v1166 = vmul.f32 %v1134, %v1147
        %v1167 = vmul.f32 %v1134, %v1151
        %v1168 = vadd.f32 %v1095, %v1152
        %v1169 = vadd.f32 %v1096, %v1153
        %v1170 = vadd.f32 %v1097, %v1154
        %v1171 = vadd.f32 %v1098, %v1155
        %v1172 = vadd.f32 %v1099, %v1156
        %v1173 = vadd.f32 %v1100, %v1157
        %v1174 = vadd.f32 %v1101, %v1158
        %v1175 = vadd.f32 %v1102, %v1159
        %v1176 = vadd.f32 %v1103, %v1160
        %v1177 = vadd.f32 %v1104, %v1161
        %v1178 = vadd.f32 %v1105, %v1162
        %v1179 = vadd.f32 %v1106, %v1163
        %v1180 = vadd.f32 %v1107, %v1164
        %v1181 = vadd.f32 %v1108, %v1165
        %v1182 = vadd.f32 %v1109, %v1166
        %v1183 = vadd.f32 %v1110, %v1167
        %s1184 = scalar_lea.vmem %s3, 320
        %v1185 = vld [vmem:[%s1184] sm:$0xff]
        %v1186 = vld [vmem:[%s1184 + $0x8] sm:$0xff]
        %v1187 = vld [vmem:[%s1184 + $0x10] sm:$0xff]
        %v1188 = vld [vmem:[%s1184 + $0x18] sm:$0xff]
        %1190 = vset.pattern.permute.xlu0 0
        %1191 = vperm.xlu0 %1190, %v1185
        %v1192 = vpop.permute.xlu0 %1191
        %1195 = vset.pattern.permute.xlu0 0
        %1196 = vperm.xlu0 %1195, %v1186
        %v1197 = vpop.permute.xlu0 %1196
        %1200 = vset.pattern.permute.xlu0 0
        %1201 = vperm.xlu0 %1200, %v1187
        %v1202 = vpop.permute.xlu0 %1201
        %1205 = vset.pattern.permute.xlu0 0
        %1206 = vperm.xlu0 %1205, %v1188
        %v1207 = vpop.permute.xlu0 %1206
        %v1209 = vlaneseq
        %v1210 = vshrl.u32 %v1209, 7
        %v1211 = vsub.s32 2, %v1210
        %v1212 = vrot.slane %v427, %v1211
        %v1213 = vlaneseq
        %v1214 = vshrl.u32 %v1213, 7
        %v1215 = vsub.s32 2, %v1214
        %v1216 = vrot.slane %v428, %v1215
        %v1217 = vlaneseq
        %v1218 = vshrl.u32 %v1217, 7
        %v1219 = vsub.s32 2, %v1218
        %v1220 = vrot.slane %v429, %v1219
        %v1221 = vlaneseq
        %v1222 = vshrl.u32 %v1221, 7
        %v1223 = vsub.s32 2, %v1222
        %v1224 = vrot.slane %v430, %v1223
        %v1225 = vmul.f32 %v1192, %v1212
        %v1226 = vmul.f32 %v1192, %v1216
        %v1227 = vmul.f32 %v1192, %v1220
        %v1228 = vmul.f32 %v1192, %v1224
        %v1229 = vmul.f32 %v1197, %v1212
        %v1230 = vmul.f32 %v1197, %v1216
        %v1231 = vmul.f32 %v1197, %v1220
        %v1232 = vmul.f32 %v1197, %v1224
        %v1233 = vmul.f32 %v1202, %v1212
        %v1234 = vmul.f32 %v1202, %v1216
        %v1235 = vmul.f32 %v1202, %v1220
        %v1236 = vmul.f32 %v1202, %v1224
        %v1237 = vmul.f32 %v1207, %v1212
        %v1238 = vmul.f32 %v1207, %v1216
        %v1239 = vmul.f32 %v1207, %v1220
        %v1240 = vmul.f32 %v1207, %v1224
        %v1241 = vadd.f32 %v1168, %v1225
        %v1242 = vadd.f32 %v1169, %v1226
        %v1243 = vadd.f32 %v1170, %v1227
        %v1244 = vadd.f32 %v1171, %v1228
        %v1245 = vadd.f32 %v1172, %v1229
        %v1246 = vadd.f32 %v1173, %v1230
        %v1247 = vadd.f32 %v1174, %v1231
        %v1248 = vadd.f32 %v1175, %v1232
        %v1249 = vadd.f32 %v1176, %v1233
        %v1250 = vadd.f32 %v1177, %v1234
        %v1251 = vadd.f32 %v1178, %v1235
        %v1252 = vadd.f32 %v1179, %v1236
        %v1253 = vadd.f32 %v1180, %v1237
        %v1254 = vadd.f32 %v1181, %v1238
        %v1255 = vadd.f32 %v1182, %v1239
        %v1256 = vadd.f32 %v1183, %v1240
        %s1257 = scalar_lea.vmem %s3, 352
        %v1258 = vld [vmem:[%s1257] sm:$0xff]
        %v1259 = vld [vmem:[%s1257 + $0x8] sm:$0xff]
        %v1260 = vld [vmem:[%s1257 + $0x10] sm:$0xff]
        %v1261 = vld [vmem:[%s1257 + $0x18] sm:$0xff]
        %1263 = vset.pattern.permute.xlu0 0
        %1264 = vperm.xlu0 %1263, %v1258
        %v1265 = vpop.permute.xlu0 %1264
        %1268 = vset.pattern.permute.xlu0 0
        %1269 = vperm.xlu0 %1268, %v1259
        %v1270 = vpop.permute.xlu0 %1269
        %1273 = vset.pattern.permute.xlu0 0
        %1274 = vperm.xlu0 %1273, %v1260
        %v1275 = vpop.permute.xlu0 %1274
        %1278 = vset.pattern.permute.xlu0 0
        %1279 = vperm.xlu0 %1278, %v1261
        %v1280 = vpop.permute.xlu0 %1279
        %v1282 = vlaneseq
        %v1283 = vshrl.u32 %v1282, 7
        %v1284 = vsub.s32 3, %v1283
        %v1285 = vrot.slane %v427, %v1284
        %v1286 = vlaneseq
        %v1287 = vshrl.u32 %v1286, 7
        %v1288 = vsub.s32 3, %v1287
        %v1289 = vrot.slane %v428, %v1288
        %v1290 = vlaneseq
        %v1291 = vshrl.u32 %v1290, 7
        %v1292 = vsub.s32 3, %v1291
        %v1293 = vrot.slane %v429, %v1292
        %v1294 = vlaneseq
        %v1295 = vshrl.u32 %v1294, 7
        %v1296 = vsub.s32 3, %v1295
        %v1297 = vrot.slane %v430, %v1296
        %v1298 = vmul.f32 %v1265, %v1285
        %v1299 = vmul.f32 %v1265, %v1289
        %v1300 = vmul.f32 %v1265, %v1293
        %v1301 = vmul.f32 %v1265, %v1297
        %v1302 = vmul.f32 %v1270, %v1285
        %v1303 = vmul.f32 %v1270, %v1289
        %v1304 = vmul.f32 %v1270, %v1293
        %v1305 = vmul.f32 %v1270, %v1297
        %v1306 = vmul.f32 %v1275, %v1285
        %v1307 = vmul.f32 %v1275, %v1289
        %v1308 = vmul.f32 %v1275, %v1293
        %v1309 = vmul.f32 %v1275, %v1297
        %v1310 = vmul.f32 %v1280, %v1285
        %v1311 = vmul.f32 %v1280, %v1289
        %v1312 = vmul.f32 %v1280, %v1293
        %v1313 = vmul.f32 %v1280, %v1297
        %v1314 = vadd.f32 %v1241, %v1298
        %v1315 = vadd.f32 %v1242, %v1299
        %v1316 = vadd.f32 %v1243, %v1300
        %v1317 = vadd.f32 %v1244, %v1301
        %v1318 = vadd.f32 %v1245, %v1302
        %v1319 = vadd.f32 %v1246, %v1303
        %v1320 = vadd.f32 %v1247, %v1304
        %v1321 = vadd.f32 %v1248, %v1305
        %v1322 = vadd.f32 %v1249, %v1306
        %v1323 = vadd.f32 %v1250, %v1307
        %v1324 = vadd.f32 %v1251, %v1308
        %v1325 = vadd.f32 %v1252, %v1309
        %v1326 = vadd.f32 %v1253, %v1310
        %v1327 = vadd.f32 %v1254, %v1311
        %v1328 = vadd.f32 %v1255, %v1312
        %v1329 = vadd.f32 %v1256, %v1313
        %s1330 = scalar_lea.vmem %s3, 384
        %v1331 = vld [vmem:[%s1330] sm:$0xff]
        %v1332 = vld [vmem:[%s1330 + $0x8] sm:$0xff]
        %v1333 = vld [vmem:[%s1330 + $0x10] sm:$0xff]
        %v1334 = vld [vmem:[%s1330 + $0x18] sm:$0xff]
        %1336 = vset.pattern.permute.xlu0 0
        %1337 = vperm.xlu0 %1336, %v1331
        %v1338 = vpop.permute.xlu0 %1337
        %1341 = vset.pattern.permute.xlu0 0
        %1342 = vperm.xlu0 %1341, %v1332
        %v1343 = vpop.permute.xlu0 %1342
        %1346 = vset.pattern.permute.xlu0 0
        %1347 = vperm.xlu0 %1346, %v1333
        %v1348 = vpop.permute.xlu0 %1347
        %1351 = vset.pattern.permute.xlu0 0
        %1352 = vperm.xlu0 %1351, %v1334
        %v1353 = vpop.permute.xlu0 %1352
        %v1355 = vlaneseq
        %v1356 = vshrl.u32 %v1355, 7
        %v1357 = vsub.s32 4, %v1356
        %v1358 = vrot.slane %v427, %v1357
        %v1359 = vlaneseq
        %v1360 = vshrl.u32 %v1359, 7
        %v1361 = vsub.s32 4, %v1360
        %v1362 = vrot.slane %v428, %v1361
        %v1363 = vlaneseq
        %v1364 = vshrl.u32 %v1363, 7
        %v1365 = vsub.s32 4, %v1364
        %v1366 = vrot.slane %v429, %v1365
        %v1367 = vlaneseq
        %v1368 = vshrl.u32 %v1367, 7
        %v1369 = vsub.s32 4, %v1368
        %v1370 = vrot.slane %v430, %v1369
        %v1371 = vmul.f32 %v1338, %v1358
        %v1372 = vmul.f32 %v1338, %v1362
        %v1373 = vmul.f32 %v1338, %v1366
        %v1374 = vmul.f32 %v1338, %v1370
        %v1375 = vmul.f32 %v1343, %v1358
        %v1376 = vmul.f32 %v1343, %v1362
        %v1377 = vmul.f32 %v1343, %v1366
        %v1378 = vmul.f32 %v1343, %v1370
        %v1379 = vmul.f32 %v1348, %v1358
        %v1380 = vmul.f32 %v1348, %v1362
        %v1381 = vmul.f32 %v1348, %v1366
        %v1382 = vmul.f32 %v1348, %v1370
        %v1383 = vmul.f32 %v1353, %v1358
        %v1384 = vmul.f32 %v1353, %v1362
        %v1385 = vmul.f32 %v1353, %v1366
        %v1386 = vmul.f32 %v1353, %v1370
        %v1387 = vadd.f32 %v1314, %v1371
        %v1388 = vadd.f32 %v1315, %v1372
        %v1389 = vadd.f32 %v1316, %v1373
        %v1390 = vadd.f32 %v1317, %v1374
        %v1391 = vadd.f32 %v1318, %v1375
        %v1392 = vadd.f32 %v1319, %v1376
        %v1393 = vadd.f32 %v1320, %v1377
        %v1394 = vadd.f32 %v1321, %v1378
        %v1395 = vadd.f32 %v1322, %v1379
        %v1396 = vadd.f32 %v1323, %v1380
        %v1397 = vadd.f32 %v1324, %v1381
        %v1398 = vadd.f32 %v1325, %v1382
        %v1399 = vadd.f32 %v1326, %v1383
        %v1400 = vadd.f32 %v1327, %v1384
        %v1401 = vadd.f32 %v1328, %v1385
        %v1402 = vadd.f32 %v1329, %v1386
        %s1403 = scalar_lea.vmem %s3, 416
        %v1404 = vld [vmem:[%s1403] sm:$0xff]
        %v1405 = vld [vmem:[%s1403 + $0x8] sm:$0xff]
        %v1406 = vld [vmem:[%s1403 + $0x10] sm:$0xff]
        %v1407 = vld [vmem:[%s1403 + $0x18] sm:$0xff]
        %1409 = vset.pattern.permute.xlu0 0
        %1410 = vperm.xlu0 %1409, %v1404
        %v1411 = vpop.permute.xlu0 %1410
        %1414 = vset.pattern.permute.xlu0 0
        %1415 = vperm.xlu0 %1414, %v1405
        %v1416 = vpop.permute.xlu0 %1415
        %1419 = vset.pattern.permute.xlu0 0
        %1420 = vperm.xlu0 %1419, %v1406
        %v1421 = vpop.permute.xlu0 %1420
        %1424 = vset.pattern.permute.xlu0 0
        %1425 = vperm.xlu0 %1424, %v1407
        %v1426 = vpop.permute.xlu0 %1425
        %v1428 = vlaneseq
        %v1429 = vshrl.u32 %v1428, 7
        %v1430 = vsub.s32 5, %v1429
        %v1431 = vrot.slane %v427, %v1430
        %v1432 = vlaneseq
        %v1433 = vshrl.u32 %v1432, 7
        %v1434 = vsub.s32 5, %v1433
        %v1435 = vrot.slane %v428, %v1434
        %v1436 = vlaneseq
        %v1437 = vshrl.u32 %v1436, 7
        %v1438 = vsub.s32 5, %v1437
        %v1439 = vrot.slane %v429, %v1438
        %v1440 = vlaneseq
        %v1441 = vshrl.u32 %v1440, 7
        %v1442 = vsub.s32 5, %v1441
        %v1443 = vrot.slane %v430, %v1442
        %v1444 = vmul.f32 %v1411, %v1431
        %v1445 = vmul.f32 %v1411, %v1435
        %v1446 = vmul.f32 %v1411, %v1439
        %v1447 = vmul.f32 %v1411, %v1443
        %v1448 = vmul.f32 %v1416, %v1431
        %v1449 = vmul.f32 %v1416, %v1435
        %v1450 = vmul.f32 %v1416, %v1439
        %v1451 = vmul.f32 %v1416, %v1443
        %v1452 = vmul.f32 %v1421, %v1431
        %v1453 = vmul.f32 %v1421, %v1435
        %v1454 = vmul.f32 %v1421, %v1439
        %v1455 = vmul.f32 %v1421, %v1443
        %v1456 = vmul.f32 %v1426, %v1431
        %v1457 = vmul.f32 %v1426, %v1435
        %v1458 = vmul.f32 %v1426, %v1439
        %v1459 = vmul.f32 %v1426, %v1443
        %v1460 = vadd.f32 %v1387, %v1444
        %v1461 = vadd.f32 %v1388, %v1445
        %v1462 = vadd.f32 %v1389, %v1446
        %v1463 = vadd.f32 %v1390, %v1447
        %v1464 = vadd.f32 %v1391, %v1448
        %v1465 = vadd.f32 %v1392, %v1449
        %v1466 = vadd.f32 %v1393, %v1450
        %v1467 = vadd.f32 %v1394, %v1451
        %v1468 = vadd.f32 %v1395, %v1452
        %v1469 = vadd.f32 %v1396, %v1453
        %v1470 = vadd.f32 %v1397, %v1454
        %v1471 = vadd.f32 %v1398, %v1455
        %v1472 = vadd.f32 %v1399, %v1456
        %v1473 = vadd.f32 %v1400, %v1457
        %v1474 = vadd.f32 %v1401, %v1458
        %v1475 = vadd.f32 %v1402, %v1459
        %s1476 = scalar_lea.vmem %s3, 448
        %v1477 = vld [vmem:[%s1476] sm:$0xff]
        %v1478 = vld [vmem:[%s1476 + $0x8] sm:$0xff]
        %v1479 = vld [vmem:[%s1476 + $0x10] sm:$0xff]
        %v1480 = vld [vmem:[%s1476 + $0x18] sm:$0xff]
        %1482 = vset.pattern.permute.xlu0 0
        %1483 = vperm.xlu0 %1482, %v1477
        %v1484 = vpop.permute.xlu0 %1483
        %1487 = vset.pattern.permute.xlu0 0
        %1488 = vperm.xlu0 %1487, %v1478
        %v1489 = vpop.permute.xlu0 %1488
        %1492 = vset.pattern.permute.xlu0 0
        %1493 = vperm.xlu0 %1492, %v1479
        %v1494 = vpop.permute.xlu0 %1493
        %1497 = vset.pattern.permute.xlu0 0
        %1498 = vperm.xlu0 %1497, %v1480
        %v1499 = vpop.permute.xlu0 %1498
        %v1501 = vlaneseq
        %v1502 = vshrl.u32 %v1501, 7
        %v1503 = vsub.s32 6, %v1502
        %v1504 = vrot.slane %v427, %v1503
        %v1505 = vlaneseq
        %v1506 = vshrl.u32 %v1505, 7
        %v1507 = vsub.s32 6, %v1506
        %v1508 = vrot.slane %v428, %v1507
        %v1509 = vlaneseq
        %v1510 = vshrl.u32 %v1509, 7
        %v1511 = vsub.s32 6, %v1510
        %v1512 = vrot.slane %v429, %v1511
        %v1513 = vlaneseq
        %v1514 = vshrl.u32 %v1513, 7
        %v1515 = vsub.s32 6, %v1514
        %v1516 = vrot.slane %v430, %v1515
        %v1517 = vmul.f32 %v1484, %v1504
        %v1518 = vmul.f32 %v1484, %v1508
        %v1519 = vmul.f32 %v1484, %v1512
        %v1520 = vmul.f32 %v1484, %v1516
        %v1521 = vmul.f32 %v1489, %v1504
        %v1522 = vmul.f32 %v1489, %v1508
        %v1523 = vmul.f32 %v1489, %v1512
        %v1524 = vmul.f32 %v1489, %v1516
        %v1525 = vmul.f32 %v1494, %v1504
        %v1526 = vmul.f32 %v1494, %v1508
        %v1527 = vmul.f32 %v1494, %v1512
        %v1528 = vmul.f32 %v1494, %v1516
        %v1529 = vmul.f32 %v1499, %v1504
        %v1530 = vmul.f32 %v1499, %v1508
        %v1531 = vmul.f32 %v1499, %v1512
        %v1532 = vmul.f32 %v1499, %v1516
        %v1533 = vadd.f32 %v1460, %v1517
        %v1534 = vadd.f32 %v1461, %v1518
        %v1535 = vadd.f32 %v1462, %v1519
        %v1536 = vadd.f32 %v1463, %v1520
        %v1537 = vadd.f32 %v1464, %v1521
        %v1538 = vadd.f32 %v1465, %v1522
        %v1539 = vadd.f32 %v1466, %v1523
        %v1540 = vadd.f32 %v1467, %v1524
        %v1541 = vadd.f32 %v1468, %v1525
        %v1542 = vadd.f32 %v1469, %v1526
        %v1543 = vadd.f32 %v1470, %v1527
        %v1544 = vadd.f32 %v1471, %v1528
        %v1545 = vadd.f32 %v1472, %v1529
        %v1546 = vadd.f32 %v1473, %v1530
        %v1547 = vadd.f32 %v1474, %v1531
        %v1548 = vadd.f32 %v1475, %v1532
        %s1549 = scalar_lea.vmem %s3, 480
        %v1550 = vld [vmem:[%s1549] sm:$0xff]
        %v1551 = vld [vmem:[%s1549 + $0x8] sm:$0xff]
        %v1552 = vld [vmem:[%s1549 + $0x10] sm:$0xff]
        %v1553 = vld [vmem:[%s1549 + $0x18] sm:$0xff]
        %1555 = vset.pattern.permute.xlu0 0
        %1556 = vperm.xlu0 %1555, %v1550
        %v1557 = vpop.permute.xlu0 %1556
        %1560 = vset.pattern.permute.xlu0 0
        %1561 = vperm.xlu0 %1560, %v1551
        %v1562 = vpop.permute.xlu0 %1561
        %1565 = vset.pattern.permute.xlu0 0
        %1566 = vperm.xlu0 %1565, %v1552
        %v1567 = vpop.permute.xlu0 %1566
        %1570 = vset.pattern.permute.xlu0 0
        %1571 = vperm.xlu0 %1570, %v1553
        %v1572 = vpop.permute.xlu0 %1571
        %v1574 = vlaneseq
        %v1575 = vshrl.u32 %v1574, 7
        %v1576 = vsub.s32 7, %v1575
        %v1577 = vrot.slane %v427, %v1576
        %v1578 = vlaneseq
        %v1579 = vshrl.u32 %v1578, 7
        %v1580 = vsub.s32 7, %v1579
        %v1581 = vrot.slane %v428, %v1580
        %v1582 = vlaneseq
        %v1583 = vshrl.u32 %v1582, 7
        %v1584 = vsub.s32 7, %v1583
        %v1585 = vrot.slane %v429, %v1584
        %v1586 = vlaneseq
        %v1587 = vshrl.u32 %v1586, 7
        %v1588 = vsub.s32 7, %v1587
        %v1589 = vrot.slane %v430, %v1588
        %v1590 = vmul.f32 %v1557, %v1577
        %v1591 = vmul.f32 %v1557, %v1581
        %v1592 = vmul.f32 %v1557, %v1585
        %v1593 = vmul.f32 %v1557, %v1589
        %v1594 = vmul.f32 %v1562, %v1577
        %v1595 = vmul.f32 %v1562, %v1581
        %v1596 = vmul.f32 %v1562, %v1585
        %v1597 = vmul.f32 %v1562, %v1589
        %v1598 = vmul.f32 %v1567, %v1577
        %v1599 = vmul.f32 %v1567, %v1581
        %v1600 = vmul.f32 %v1567, %v1585
        %v1601 = vmul.f32 %v1567, %v1589
        %v1602 = vmul.f32 %v1572, %v1577
        %v1603 = vmul.f32 %v1572, %v1581
        %v1604 = vmul.f32 %v1572, %v1585
        %v1605 = vmul.f32 %v1572, %v1589
        %v1606 = vadd.f32 %v1533, %v1590
        %v1607 = vadd.f32 %v1534, %v1591
        %v1608 = vadd.f32 %v1535, %v1592
        %v1609 = vadd.f32 %v1536, %v1593
        %v1610 = vadd.f32 %v1537, %v1594
        %v1611 = vadd.f32 %v1538, %v1595
        %v1612 = vadd.f32 %v1539, %v1596
        %v1613 = vadd.f32 %v1540, %v1597
        %v1614 = vadd.f32 %v1541, %v1598
        %v1615 = vadd.f32 %v1542, %v1599
        %v1616 = vadd.f32 %v1543, %v1600
        %v1617 = vadd.f32 %v1544, %v1601
        %v1618 = vadd.f32 %v1545, %v1602
        %v1619 = vadd.f32 %v1546, %v1603
        %v1620 = vadd.f32 %v1547, %v1604
        %v1621 = vadd.f32 %v1548, %v1605
        %v1622 = vmax.f32 %v1606, 0.0
        %v1623 = vmax.f32 %v1607, 0.0
        %v1624 = vmax.f32 %v1608, 0.0
        %v1625 = vmax.f32 %v1609, 0.0
        %v1626 = vmax.f32 %v1610, 0.0
        %v1627 = vmax.f32 %v1611, 0.0
        %v1628 = vmax.f32 %v1612, 0.0
        %v1629 = vmax.f32 %v1613, 0.0
        %v1630 = vmax.f32 %v1614, 0.0
        %v1631 = vmax.f32 %v1615, 0.0
        %v1632 = vmax.f32 %v1616, 0.0
        %v1633 = vmax.f32 %v1617, 0.0
        %v1634 = vmax.f32 %v1618, 0.0
        %v1635 = vmax.f32 %v1619, 0.0
        %v1636 = vmax.f32 %v1620, 0.0
        %v1637 = vmax.f32 %v1621, 0.0
        %v1638 = vld [vmem:[%s6] sm:$0x3]
        %1640 = vset.pattern.permute.xlu0 0
        %1641 = vperm.xlu0 %1640, %v1638
        %v1642 = vpop.permute.xlu0 %1641
        %v1644 = vld [vmem:[%s5] sm:$0x3]
        %1646 = vset.pattern.permute.xlu0 0
        %1647 = vperm.xlu0 %1646, %v1644
        %v1648 = vpop.permute.xlu0 %1647
        %v1650 = vlaneseq
        %v1651 = vshrl.u32 %v1650, 7
        %v1652 = vsub.s32 0, %v1651
        %v1653 = vrot.slane %v1622, %v1652
        %v1654 = vlaneseq
        %v1655 = vshrl.u32 %v1654, 7
        %v1656 = vsub.s32 0, %v1655
        %v1657 = vrot.slane %v1623, %v1656
        %v1658 = vlaneseq
        %v1659 = vshrl.u32 %v1658, 7
        %v1660 = vsub.s32 0, %v1659
        %v1661 = vrot.slane %v1624, %v1660
        %v1662 = vlaneseq
        %v1663 = vshrl.u32 %v1662, 7
        %v1664 = vsub.s32 0, %v1663
        %v1665 = vrot.slane %v1625, %v1664
        %v1666 = vmul.f32 %v1648, %v1653
        %v1667 = vmul.f32 %v1648, %v1657
        %v1668 = vmul.f32 %v1648, %v1661
        %v1669 = vmul.f32 %v1648, %v1665
        %v1670 = vadd.f32 %v1642, %v1666
        %v1671 = vadd.f32 %v1642, %v1667
        %v1672 = vadd.f32 %v1642, %v1668
        %v1673 = vadd.f32 %v1642, %v1669
        %s1674 = scalar_lea.vmem %s5, 2
        %v1675 = vld [vmem:[%s1674] sm:$0x3]
        %1677 = vset.pattern.permute.xlu0 0
        %1678 = vperm.xlu0 %1677, %v1675
        %v1679 = vpop.permute.xlu0 %1678
        %v1681 = vlaneseq
        %v1682 = vshrl.u32 %v1681, 7
        %v1683 = vsub.s32 1, %v1682
        %v1684 = vrot.slane %v1622, %v1683
        %v1685 = vlaneseq
        %v1686 = vshrl.u32 %v1685, 7
        %v1687 = vsub.s32 1, %v1686
        %v1688 = vrot.slane %v1623, %v1687
        %v1689 = vlaneseq
        %v1690 = vshrl.u32 %v1689, 7
        %v1691 = vsub.s32 1, %v1690
        %v1692 = vrot.slane %v1624, %v1691
        %v1693 = vlaneseq
        %v1694 = vshrl.u32 %v1693, 7
        %v1695 = vsub.s32 1, %v1694
        %v1696 = vrot.slane %v1625, %v1695
        %v1697 = vmul.f32 %v1679, %v1684
        %v1698 = vmul.f32 %v1679, %v1688
        %v1699 = vmul.f32 %v1679, %v1692
        %v1700 = vmul.f32 %v1679, %v1696
        %v1701 = vadd.f32 %v1670, %v1697
        %v1702 = vadd.f32 %v1671, %v1698
        %v1703 = vadd.f32 %v1672, %v1699
        %v1704 = vadd.f32 %v1673, %v1700
        %s1705 = scalar_lea.vmem %s5, 4
        %v1706 = vld [vmem:[%s1705] sm:$0x3]
        %1708 = vset.pattern.permute.xlu0 0
        %1709 = vperm.xlu0 %1708, %v1706
        %v1710 = vpop.permute.xlu0 %1709
        %v1712 = vlaneseq
        %v1713 = vshrl.u32 %v1712, 7
        %v1714 = vsub.s32 2, %v1713
        %v1715 = vrot.slane %v1622, %v1714
        %v1716 = vlaneseq
        %v1717 = vshrl.u32 %v1716, 7
        %v1718 = vsub.s32 2, %v1717
        %v1719 = vrot.slane %v1623, %v1718
        %v1720 = vlaneseq
        %v1721 = vshrl.u32 %v1720, 7
        %v1722 = vsub.s32 2, %v1721
        %v1723 = vrot.slane %v1624, %v1722
        %v1724 = vlaneseq
        %v1725 = vshrl.u32 %v1724, 7
        %v1726 = vsub.s32 2, %v1725
        %v1727 = vrot.slane %v1625, %v1726
        %v1728 = vmul.f32 %v1710, %v1715
        %v1729 = vmul.f32 %v1710, %v1719
        %v1730 = vmul.f32 %v1710, %v1723
        %v1731 = vmul.f32 %v1710, %v1727
        %v1732 = vadd.f32 %v1701, %v1728
        %v1733 = vadd.f32 %v1702, %v1729
        %v1734 = vadd.f32 %v1703, %v1730
        %v1735 = vadd.f32 %v1704, %v1731
        %s1736 = scalar_lea.vmem %s5, 6
        %v1737 = vld [vmem:[%s1736] sm:$0x3]
        %1739 = vset.pattern.permute.xlu0 0
        %1740 = vperm.xlu0 %1739, %v1737
        %v1741 = vpop.permute.xlu0 %1740
        %v1743 = vlaneseq
        %v1744 = vshrl.u32 %v1743, 7
        %v1745 = vsub.s32 3, %v1744
        %v1746 = vrot.slane %v1622, %v1745
        %v1747 = vlaneseq
        %v1748 = vshrl.u32 %v1747, 7
        %v1749 = vsub.s32 3, %v1748
        %v1750 = vrot.slane %v1623, %v1749
        %v1751 = vlaneseq
        %v1752 = vshrl.u32 %v1751, 7
        %v1753 = vsub.s32 3, %v1752
        %v1754 = vrot.slane %v1624, %v1753
        %v1755 = vlaneseq
        %v1756 = vshrl.u32 %v1755, 7
        %v1757 = vsub.s32 3, %v1756
        %v1758 = vrot.slane %v1625, %v1757
        %v1759 = vmul.f32 %v1741, %v1746
        %v1760 = vmul.f32 %v1741, %v1750
        %v1761 = vmul.f32 %v1741, %v1754
        %v1762 = vmul.f32 %v1741, %v1758
        %v1763 = vadd.f32 %v1732, %v1759
        %v1764 = vadd.f32 %v1733, %v1760
        %v1765 = vadd.f32 %v1734, %v1761
        %v1766 = vadd.f32 %v1735, %v1762
        %s1767 = scalar_lea.vmem %s5, 8
        %v1768 = vld [vmem:[%s1767] sm:$0x3]
        %1770 = vset.pattern.permute.xlu0 0
        %1771 = vperm.xlu0 %1770, %v1768
        %v1772 = vpop.permute.xlu0 %1771
        %v1774 = vlaneseq
        %v1775 = vshrl.u32 %v1774, 7
        %v1776 = vsub.s32 4, %v1775
        %v1777 = vrot.slane %v1622, %v1776
        %v1778 = vlaneseq
        %v1779 = vshrl.u32 %v1778, 7
        %v1780 = vsub.s32 4, %v1779
        %v1781 = vrot.slane %v1623, %v1780
        %v1782 = vlaneseq
        %v1783 = vshrl.u32 %v1782, 7
        %v1784 = vsub.s32 4, %v1783
        %v1785 = vrot.slane %v1624, %v1784
        %v1786 = vlaneseq
        %v1787 = vshrl.u32 %v1786, 7
        %v1788 = vsub.s32 4, %v1787
        %v1789 = vrot.slane %v1625, %v1788
        %v1790 = vmul.f32 %v1772, %v1777
        %v1791 = vmul.f32 %v1772, %v1781
        %v1792 = vmul.f32 %v1772, %v1785
        %v1793 = vmul.f32 %v1772, %v1789
        %v1794 = vadd.f32 %v1763, %v1790
        %v1795 = vadd.f32 %v1764, %v1791
        %v1796 = vadd.f32 %v1765, %v1792
        %v1797 = vadd.f32 %v1766, %v1793
        %s1798 = scalar_lea.vmem %s5, 10
        %v1799 = vld [vmem:[%s1798] sm:$0x3]
        %1801 = vset.pattern.permute.xlu0 0
        %1802 = vperm.xlu0 %1801, %v1799
        %v1803 = vpop.permute.xlu0 %1802
        %v1805 = vlaneseq
        %v1806 = vshrl.u32 %v1805, 7
        %v1807 = vsub.s32 5, %v1806
        %v1808 = vrot.slane %v1622, %v1807
        %v1809 = vlaneseq
        %v1810 = vshrl.u32 %v1809, 7
        %v1811 = vsub.s32 5, %v1810
        %v1812 = vrot.slane %v1623, %v1811
        %v1813 = vlaneseq
        %v1814 = vshrl.u32 %v1813, 7
        %v1815 = vsub.s32 5, %v1814
        %v1816 = vrot.slane %v1624, %v1815
        %v1817 = vlaneseq
        %v1818 = vshrl.u32 %v1817, 7
        %v1819 = vsub.s32 5, %v1818
        %v1820 = vrot.slane %v1625, %v1819
        %v1821 = vmul.f32 %v1803, %v1808
        %v1822 = vmul.f32 %v1803, %v1812
        %v1823 = vmul.f32 %v1803, %v1816
        %v1824 = vmul.f32 %v1803, %v1820
        %v1825 = vadd.f32 %v1794, %v1821
        %v1826 = vadd.f32 %v1795, %v1822
        %v1827 = vadd.f32 %v1796, %v1823
        %v1828 = vadd.f32 %v1797, %v1824
        %s1829 = scalar_lea.vmem %s5, 12
        %v1830 = vld [vmem:[%s1829] sm:$0x3]
        %1832 = vset.pattern.permute.xlu0 0
        %1833 = vperm.xlu0 %1832, %v1830
        %v1834 = vpop.permute.xlu0 %1833
        %v1836 = vlaneseq
        %v1837 = vshrl.u32 %v1836, 7
        %v1838 = vsub.s32 6, %v1837
        %v1839 = vrot.slane %v1622, %v1838
        %v1840 = vlaneseq
        %v1841 = vshrl.u32 %v1840, 7
        %v1842 = vsub.s32 6, %v1841
        %v1843 = vrot.slane %v1623, %v1842
        %v1844 = vlaneseq
        %v1845 = vshrl.u32 %v1844, 7
        %v1846 = vsub.s32 6, %v1845
        %v1847 = vrot.slane %v1624, %v1846
        %v1848 = vlaneseq
        %v1849 = vshrl.u32 %v1848, 7
        %v1850 = vsub.s32 6, %v1849
        %v1851 = vrot.slane %v1625, %v1850
        %v1852 = vmul.f32 %v1834, %v1839
        %v1853 = vmul.f32 %v1834, %v1843
        %v1854 = vmul.f32 %v1834, %v1847
        %v1855 = vmul.f32 %v1834, %v1851
        %v1856 = vadd.f32 %v1825, %v1852
        %v1857 = vadd.f32 %v1826, %v1853
        %v1858 = vadd.f32 %v1827, %v1854
        %v1859 = vadd.f32 %v1828, %v1855
        %s1860 = scalar_lea.vmem %s5, 14
        %v1861 = vld [vmem:[%s1860] sm:$0x3]
        %1863 = vset.pattern.permute.xlu0 0
        %1864 = vperm.xlu0 %1863, %v1861
        %v1865 = vpop.permute.xlu0 %1864
        %v1867 = vlaneseq
        %v1868 = vshrl.u32 %v1867, 7
        %v1869 = vsub.s32 7, %v1868
        %v1870 = vrot.slane %v1622, %v1869
        %v1871 = vlaneseq
        %v1872 = vshrl.u32 %v1871, 7
        %v1873 = vsub.s32 7, %v1872
        %v1874 = vrot.slane %v1623, %v1873
        %v1875 = vlaneseq
        %v1876 = vshrl.u32 %v1875, 7
        %v1877 = vsub.s32 7, %v1876
        %v1878 = vrot.slane %v1624, %v1877
        %v1879 = vlaneseq
        %v1880 = vshrl.u32 %v1879, 7
        %v1881 = vsub.s32 7, %v1880
        %v1882 = vrot.slane %v1625, %v1881
        %v1883 = vmul.f32 %v1865, %v1870
        %v1884 = vmul.f32 %v1865, %v1874
        %v1885 = vmul.f32 %v1865, %v1878
        %v1886 = vmul.f32 %v1865, %v1882
        %v1887 = vadd.f32 %v1856, %v1883
        %v1888 = vadd.f32 %v1857, %v1884
        %v1889 = vadd.f32 %v1858, %v1885
        %v1890 = vadd.f32 %v1859, %v1886
        %s1891 = scalar_lea.vmem %s5, 16
        %v1892 = vld [vmem:[%s1891] sm:$0x3]
        %1894 = vset.pattern.permute.xlu0 0
        %1895 = vperm.xlu0 %1894, %v1892
        %v1896 = vpop.permute.xlu0 %1895
        %v1898 = vlaneseq
        %v1899 = vshrl.u32 %v1898, 7
        %v1900 = vsub.s32 0, %v1899
        %v1901 = vrot.slane %v1626, %v1900
        %v1902 = vlaneseq
        %v1903 = vshrl.u32 %v1902, 7
        %v1904 = vsub.s32 0, %v1903
        %v1905 = vrot.slane %v1627, %v1904
        %v1906 = vlaneseq
        %v1907 = vshrl.u32 %v1906, 7
        %v1908 = vsub.s32 0, %v1907
        %v1909 = vrot.slane %v1628, %v1908
        %v1910 = vlaneseq
        %v1911 = vshrl.u32 %v1910, 7
        %v1912 = vsub.s32 0, %v1911
        %v1913 = vrot.slane %v1629, %v1912
        %v1914 = vmul.f32 %v1896, %v1901
        %v1915 = vmul.f32 %v1896, %v1905
        %v1916 = vmul.f32 %v1896, %v1909
        %v1917 = vmul.f32 %v1896, %v1913
        %v1918 = vadd.f32 %v1887, %v1914
        %v1919 = vadd.f32 %v1888, %v1915
        %v1920 = vadd.f32 %v1889, %v1916
        %v1921 = vadd.f32 %v1890, %v1917
        %s1922 = scalar_lea.vmem %s5, 18
        %v1923 = vld [vmem:[%s1922] sm:$0x3]
        %1925 = vset.pattern.permute.xlu0 0
        %1926 = vperm.xlu0 %1925, %v1923
        %v1927 = vpop.permute.xlu0 %1926
        %v1929 = vlaneseq
        %v1930 = vshrl.u32 %v1929, 7
        %v1931 = vsub.s32 1, %v1930
        %v1932 = vrot.slane %v1626, %v1931
        %v1933 = vlaneseq
        %v1934 = vshrl.u32 %v1933, 7
        %v1935 = vsub.s32 1, %v1934
        %v1936 = vrot.slane %v1627, %v1935
        %v1937 = vlaneseq
        %v1938 = vshrl.u32 %v1937, 7
        %v1939 = vsub.s32 1, %v1938
        %v1940 = vrot.slane %v1628, %v1939
        %v1941 = vlaneseq
        %v1942 = vshrl.u32 %v1941, 7
        %v1943 = vsub.s32 1, %v1942
        %v1944 = vrot.slane %v1629, %v1943
        %v1945 = vmul.f32 %v1927, %v1932
        %v1946 = vmul.f32 %v1927, %v1936
        %v1947 = vmul.f32 %v1927, %v1940
        %v1948 = vmul.f32 %v1927, %v1944
        %v1949 = vadd.f32 %v1918, %v1945
        %v1950 = vadd.f32 %v1919, %v1946
        %v1951 = vadd.f32 %v1920, %v1947
        %v1952 = vadd.f32 %v1921, %v1948
        %s1953 = scalar_lea.vmem %s5, 20
        %v1954 = vld [vmem:[%s1953] sm:$0x3]
        %1956 = vset.pattern.permute.xlu0 0
        %1957 = vperm.xlu0 %1956, %v1954
        %v1958 = vpop.permute.xlu0 %1957
        %v1960 = vlaneseq
        %v1961 = vshrl.u32 %v1960, 7
        %v1962 = vsub.s32 2, %v1961
        %v1963 = vrot.slane %v1626, %v1962
        %v1964 = vlaneseq
        %v1965 = vshrl.u32 %v1964, 7
        %v1966 = vsub.s32 2, %v1965
        %v1967 = vrot.slane %v1627, %v1966
        %v1968 = vlaneseq
        %v1969 = vshrl.u32 %v1968, 7
        %v1970 = vsub.s32 2, %v1969
        %v1971 = vrot.slane %v1628, %v1970
        %v1972 = vlaneseq
        %v1973 = vshrl.u32 %v1972, 7
        %v1974 = vsub.s32 2, %v1973
        %v1975 = vrot.slane %v1629, %v1974
        %v1976 = vmul.f32 %v1958, %v1963
        %v1977 = vmul.f32 %v1958, %v1967
        %v1978 = vmul.f32 %v1958, %v1971
        %v1979 = vmul.f32 %v1958, %v1975
        %v1980 = vadd.f32 %v1949, %v1976
        %v1981 = vadd.f32 %v1950, %v1977
        %v1982 = vadd.f32 %v1951, %v1978
        %v1983 = vadd.f32 %v1952, %v1979
        %s1984 = scalar_lea.vmem %s5, 22
        %v1985 = vld [vmem:[%s1984] sm:$0x3]
        %1987 = vset.pattern.permute.xlu0 0
        %1988 = vperm.xlu0 %1987, %v1985
        %v1989 = vpop.permute.xlu0 %1988
        %v1991 = vlaneseq
        %v1992 = vshrl.u32 %v1991, 7
        %v1993 = vsub.s32 3, %v1992
        %v1994 = vrot.slane %v1626, %v1993
        %v1995 = vlaneseq
        %v1996 = vshrl.u32 %v1995, 7
        %v1997 = vsub.s32 3, %v1996
        %v1998 = vrot.slane %v1627, %v1997
        %v1999 = vlaneseq
        %v2000 = vshrl.u32 %v1999, 7
        %v2001 = vsub.s32 3, %v2000
        %v2002 = vrot.slane %v1628, %v2001
        %v2003 = vlaneseq
        %v2004 = vshrl.u32 %v2003, 7
        %v2005 = vsub.s32 3, %v2004
        %v2006 = vrot.slane %v1629, %v2005
        %v2007 = vmul.f32 %v1989, %v1994
        %v2008 = vmul.f32 %v1989, %v1998
        %v2009 = vmul.f32 %v1989, %v2002
        %v2010 = vmul.f32 %v1989, %v2006
        %v2011 = vadd.f32 %v1980, %v2007
        %v2012 = vadd.f32 %v1981, %v2008
        %v2013 = vadd.f32 %v1982, %v2009
        %v2014 = vadd.f32 %v1983, %v2010
        %s2015 = scalar_lea.vmem %s5, 24
        %v2016 = vld [vmem:[%s2015] sm:$0x3]
        %2018 = vset.pattern.permute.xlu0 0
        %2019 = vperm.xlu0 %2018, %v2016
        %v2020 = vpop.permute.xlu0 %2019
        %v2022 = vlaneseq
        %v2023 = vshrl.u32 %v2022, 7
        %v2024 = vsub.s32 4, %v2023
        %v2025 = vrot.slane %v1626, %v2024
        %v2026 = vlaneseq
        %v2027 = vshrl.u32 %v2026, 7
        %v2028 = vsub.s32 4, %v2027
        %v2029 = vrot.slane %v1627, %v2028
        %v2030 = vlaneseq
        %v2031 = vshrl.u32 %v2030, 7
        %v2032 = vsub.s32 4, %v2031
        %v2033 = vrot.slane %v1628, %v2032
        %v2034 = vlaneseq
        %v2035 = vshrl.u32 %v2034, 7
        %v2036 = vsub.s32 4, %v2035
        %v2037 = vrot.slane %v1629, %v2036
        %v2038 = vmul.f32 %v2020, %v2025
        %v2039 = vmul.f32 %v2020, %v2029
        %v2040 = vmul.f32 %v2020, %v2033
        %v2041 = vmul.f32 %v2020, %v2037
        %v2042 = vadd.f32 %v2011, %v2038
        %v2043 = vadd.f32 %v2012, %v2039
        %v2044 = vadd.f32 %v2013, %v2040
        %v2045 = vadd.f32 %v2014, %v2041
        %s2046 = scalar_lea.vmem %s5, 26
        %v2047 = vld [vmem:[%s2046] sm:$0x3]
        %2049 = vset.pattern.permute.xlu0 0
        %2050 = vperm.xlu0 %2049, %v2047
        %v2051 = vpop.permute.xlu0 %2050
        %v2053 = vlaneseq
        %v2054 = vshrl.u32 %v2053, 7
        %v2055 = vsub.s32 5, %v2054
        %v2056 = vrot.slane %v1626, %v2055
        %v2057 = vlaneseq
        %v2058 = vshrl.u32 %v2057, 7
        %v2059 = vsub.s32 5, %v2058
        %v2060 = vrot.slane %v1627, %v2059
        %v2061 = vlaneseq
        %v2062 = vshrl.u32 %v2061, 7
        %v2063 = vsub.s32 5, %v2062
        %v2064 = vrot.slane %v1628, %v2063
        %v2065 = vlaneseq
        %v2066 = vshrl.u32 %v2065, 7
        %v2067 = vsub.s32 5, %v2066
        %v2068 = vrot.slane %v1629, %v2067
        %v2069 = vmul.f32 %v2051, %v2056
        %v2070 = vmul.f32 %v2051, %v2060
        %v2071 = vmul.f32 %v2051, %v2064
        %v2072 = vmul.f32 %v2051, %v2068
        %v2073 = vadd.f32 %v2042, %v2069
        %v2074 = vadd.f32 %v2043, %v2070
        %v2075 = vadd.f32 %v2044, %v2071
        %v2076 = vadd.f32 %v2045, %v2072
        %s2077 = scalar_lea.vmem %s5, 28
        %v2078 = vld [vmem:[%s2077] sm:$0x3]
        %2080 = vset.pattern.permute.xlu0 0
        %2081 = vperm.xlu0 %2080, %v2078
        %v2082 = vpop.permute.xlu0 %2081
        %v2084 = vlaneseq
        %v2085 = vshrl.u32 %v2084, 7
        %v2086 = vsub.s32 6, %v2085
        %v2087 = vrot.slane %v1626, %v2086
        %v2088 = vlaneseq
        %v2089 = vshrl.u32 %v2088, 7
        %v2090 = vsub.s32 6, %v2089
        %v2091 = vrot.slane %v1627, %v2090
        %v2092 = vlaneseq
        %v2093 = vshrl.u32 %v2092, 7
        %v2094 = vsub.s32 6, %v2093
        %v2095 = vrot.slane %v1628, %v2094
        %v2096 = vlaneseq
        %v2097 = vshrl.u32 %v2096, 7
        %v2098 = vsub.s32 6, %v2097
        %v2099 = vrot.slane %v1629, %v2098
        %v2100 = vmul.f32 %v2082, %v2087
        %v2101 = vmul.f32 %v2082, %v2091
        %v2102 = vmul.f32 %v2082, %v2095
        %v2103 = vmul.f32 %v2082, %v2099
        %v2104 = vadd.f32 %v2073, %v2100
        %v2105 = vadd.f32 %v2074, %v2101
        %v2106 = vadd.f32 %v2075, %v2102
        %v2107 = vadd.f32 %v2076, %v2103
        %s2108 = scalar_lea.vmem %s5, 30
        %v2109 = vld [vmem:[%s2108] sm:$0x3]
        %2111 = vset.pattern.permute.xlu0 0
        %2112 = vperm.xlu0 %2111, %v2109
        %v2113 = vpop.permute.xlu0 %2112
        %v2115 = vlaneseq
        %v2116 = vshrl.u32 %v2115, 7
        %v2117 = vsub.s32 7, %v2116
        %v2118 = vrot.slane %v1626, %v2117
        %v2119 = vlaneseq
        %v2120 = vshrl.u32 %v2119, 7
        %v2121 = vsub.s32 7, %v2120
        %v2122 = vrot.slane %v1627, %v2121
        %v2123 = vlaneseq
        %v2124 = vshrl.u32 %v2123, 7
        %v2125 = vsub.s32 7, %v2124
        %v2126 = vrot.slane %v1628, %v2125
        %v2127 = vlaneseq
        %v2128 = vshrl.u32 %v2127, 7
        %v2129 = vsub.s32 7, %v2128
        %v2130 = vrot.slane %v1629, %v2129
        %v2131 = vmul.f32 %v2113, %v2118
        %v2132 = vmul.f32 %v2113, %v2122
        %v2133 = vmul.f32 %v2113, %v2126
        %v2134 = vmul.f32 %v2113, %v2130
        %v2135 = vadd.f32 %v2104, %v2131
        %v2136 = vadd.f32 %v2105, %v2132
        %v2137 = vadd.f32 %v2106, %v2133
        %v2138 = vadd.f32 %v2107, %v2134
        %s2139 = scalar_lea.vmem %s5, 32
        %v2140 = vld [vmem:[%s2139] sm:$0x3]
        %2142 = vset.pattern.permute.xlu0 0
        %2143 = vperm.xlu0 %2142, %v2140
        %v2144 = vpop.permute.xlu0 %2143
        %v2146 = vlaneseq
        %v2147 = vshrl.u32 %v2146, 7
        %v2148 = vsub.s32 0, %v2147
        %v2149 = vrot.slane %v1630, %v2148
        %v2150 = vlaneseq
        %v2151 = vshrl.u32 %v2150, 7
        %v2152 = vsub.s32 0, %v2151
        %v2153 = vrot.slane %v1631, %v2152
        %v2154 = vlaneseq
        %v2155 = vshrl.u32 %v2154, 7
        %v2156 = vsub.s32 0, %v2155
        %v2157 = vrot.slane %v1632, %v2156
        %v2158 = vlaneseq
        %v2159 = vshrl.u32 %v2158, 7
        %v2160 = vsub.s32 0, %v2159
        %v2161 = vrot.slane %v1633, %v2160
        %v2162 = vmul.f32 %v2144, %v2149
        %v2163 = vmul.f32 %v2144, %v2153
        %v2164 = vmul.f32 %v2144, %v2157
        %v2165 = vmul.f32 %v2144, %v2161
        %v2166 = vadd.f32 %v2135, %v2162
        %v2167 = vadd.f32 %v2136, %v2163
        %v2168 = vadd.f32 %v2137, %v2164
        %v2169 = vadd.f32 %v2138, %v2165
        %s2170 = scalar_lea.vmem %s5, 34
        %v2171 = vld [vmem:[%s2170] sm:$0x3]
        %2173 = vset.pattern.permute.xlu0 0
        %2174 = vperm.xlu0 %2173, %v2171
        %v2175 = vpop.permute.xlu0 %2174
        %v2177 = vlaneseq
        %v2178 = vshrl.u32 %v2177, 7
        %v2179 = vsub.s32 1, %v2178
        %v2180 = vrot.slane %v1630, %v2179
        %v2181 = vlaneseq
        %v2182 = vshrl.u32 %v2181, 7
        %v2183 = vsub.s32 1, %v2182
        %v2184 = vrot.slane %v1631, %v2183
        %v2185 = vlaneseq
        %v2186 = vshrl.u32 %v2185, 7
        %v2187 = vsub.s32 1, %v2186
        %v2188 = vrot.slane %v1632, %v2187
        %v2189 = vlaneseq
        %v2190 = vshrl.u32 %v2189, 7
        %v2191 = vsub.s32 1, %v2190
        %v2192 = vrot.slane %v1633, %v2191
        %v2193 = vmul.f32 %v2175, %v2180
        %v2194 = vmul.f32 %v2175, %v2184
        %v2195 = vmul.f32 %v2175, %v2188
        %v2196 = vmul.f32 %v2175, %v2192
        %v2197 = vadd.f32 %v2166, %v2193
        %v2198 = vadd.f32 %v2167, %v2194
        %v2199 = vadd.f32 %v2168, %v2195
        %v2200 = vadd.f32 %v2169, %v2196
        %s2201 = scalar_lea.vmem %s5, 36
        %v2202 = vld [vmem:[%s2201] sm:$0x3]
        %2204 = vset.pattern.permute.xlu0 0
        %2205 = vperm.xlu0 %2204, %v2202
        %v2206 = vpop.permute.xlu0 %2205
        %v2208 = vlaneseq
        %v2209 = vshrl.u32 %v2208, 7
        %v2210 = vsub.s32 2, %v2209
        %v2211 = vrot.slane %v1630, %v2210
        %v2212 = vlaneseq
        %v2213 = vshrl.u32 %v2212, 7
        %v2214 = vsub.s32 2, %v2213
        %v2215 = vrot.slane %v1631, %v2214
        %v2216 = vlaneseq
        %v2217 = vshrl.u32 %v2216, 7
        %v2218 = vsub.s32 2, %v2217
        %v2219 = vrot.slane %v1632, %v2218
        %v2220 = vlaneseq
        %v2221 = vshrl.u32 %v2220, 7
        %v2222 = vsub.s32 2, %v2221
        %v2223 = vrot.slane %v1633, %v2222
        %v2224 = vmul.f32 %v2206, %v2211
        %v2225 = vmul.f32 %v2206, %v2215
        %v2226 = vmul.f32 %v2206, %v2219
        %v2227 = vmul.f32 %v2206, %v2223
        %v2228 = vadd.f32 %v2197, %v2224
        %v2229 = vadd.f32 %v2198, %v2225
        %v2230 = vadd.f32 %v2199, %v2226
        %v2231 = vadd.f32 %v2200, %v2227
        %s2232 = scalar_lea.vmem %s5, 38
        %v2233 = vld [vmem:[%s2232] sm:$0x3]
        %2235 = vset.pattern.permute.xlu0 0
        %2236 = vperm.xlu0 %2235, %v2233
        %v2237 = vpop.permute.xlu0 %2236
        %v2239 = vlaneseq
        %v2240 = vshrl.u32 %v2239, 7
        %v2241 = vsub.s32 3, %v2240
        %v2242 = vrot.slane %v1630, %v2241
        %v2243 = vlaneseq
        %v2244 = vshrl.u32 %v2243, 7
        %v2245 = vsub.s32 3, %v2244
        %v2246 = vrot.slane %v1631, %v2245
        %v2247 = vlaneseq
        %v2248 = vshrl.u32 %v2247, 7
        %v2249 = vsub.s32 3, %v2248
        %v2250 = vrot.slane %v1632, %v2249
        %v2251 = vlaneseq
        %v2252 = vshrl.u32 %v2251, 7
        %v2253 = vsub.s32 3, %v2252
        %v2254 = vrot.slane %v1633, %v2253
        %v2255 = vmul.f32 %v2237, %v2242
        %v2256 = vmul.f32 %v2237, %v2246
        %v2257 = vmul.f32 %v2237, %v2250
        %v2258 = vmul.f32 %v2237, %v2254
        %v2259 = vadd.f32 %v2228, %v2255
        %v2260 = vadd.f32 %v2229, %v2256
        %v2261 = vadd.f32 %v2230, %v2257
        %v2262 = vadd.f32 %v2231, %v2258
        %s2263 = scalar_lea.vmem %s5, 40
        %v2264 = vld [vmem:[%s2263] sm:$0x3]
        %2266 = vset.pattern.permute.xlu0 0
        %2267 = vperm.xlu0 %2266, %v2264
        %v2268 = vpop.permute.xlu0 %2267
        %v2270 = vlaneseq
        %v2271 = vshrl.u32 %v2270, 7
        %v2272 = vsub.s32 4, %v2271
        %v2273 = vrot.slane %v1630, %v2272
        %v2274 = vlaneseq
        %v2275 = vshrl.u32 %v2274, 7
        %v2276 = vsub.s32 4, %v2275
        %v2277 = vrot.slane %v1631, %v2276
        %v2278 = vlaneseq
        %v2279 = vshrl.u32 %v2278, 7
        %v2280 = vsub.s32 4, %v2279
        %v2281 = vrot.slane %v1632, %v2280
        %v2282 = vlaneseq
        %v2283 = vshrl.u32 %v2282, 7
        %v2284 = vsub.s32 4, %v2283
        %v2285 = vrot.slane %v1633, %v2284
        %v2286 = vmul.f32 %v2268, %v2273
        %v2287 = vmul.f32 %v2268, %v2277
        %v2288 = vmul.f32 %v2268, %v2281
        %v2289 = vmul.f32 %v2268, %v2285
        %v2290 = vadd.f32 %v2259, %v2286
        %v2291 = vadd.f32 %v2260, %v2287
        %v2292 = vadd.f32 %v2261, %v2288
        %v2293 = vadd.f32 %v2262, %v2289
        %s2294 = scalar_lea.vmem %s5, 42
        %v2295 = vld [vmem:[%s2294] sm:$0x3]
        %2297 = vset.pattern.permute.xlu0 0
        %2298 = vperm.xlu0 %2297, %v2295
        %v2299 = vpop.permute.xlu0 %2298
        %v2301 = vlaneseq
        %v2302 = vshrl.u32 %v2301, 7
        %v2303 = vsub.s32 5, %v2302
        %v2304 = vrot.slane %v1630, %v2303
        %v2305 = vlaneseq
        %v2306 = vshrl.u32 %v2305, 7
        %v2307 = vsub.s32 5, %v2306
        %v2308 = vrot.slane %v1631, %v2307
        %v2309 = vlaneseq
        %v2310 = vshrl.u32 %v2309, 7
        %v2311 = vsub.s32 5, %v2310
        %v2312 = vrot.slane %v1632, %v2311
        %v2313 = vlaneseq
        %v2314 = vshrl.u32 %v2313, 7
        %v2315 = vsub.s32 5, %v2314
        %v2316 = vrot.slane %v1633, %v2315
        %v2317 = vmul.f32 %v2299, %v2304
        %v2318 = vmul.f32 %v2299, %v2308
        %v2319 = vmul.f32 %v2299, %v2312
        %v2320 = vmul.f32 %v2299, %v2316
        %v2321 = vadd.f32 %v2290, %v2317
        %v2322 = vadd.f32 %v2291, %v2318
        %v2323 = vadd.f32 %v2292, %v2319
        %v2324 = vadd.f32 %v2293, %v2320
        %s2325 = scalar_lea.vmem %s5, 44
        %v2326 = vld [vmem:[%s2325] sm:$0x3]
        %2328 = vset.pattern.permute.xlu0 0
        %2329 = vperm.xlu0 %2328, %v2326
        %v2330 = vpop.permute.xlu0 %2329
        %v2332 = vlaneseq
        %v2333 = vshrl.u32 %v2332, 7
        %v2334 = vsub.s32 6, %v2333
        %v2335 = vrot.slane %v1630, %v2334
        %v2336 = vlaneseq
        %v2337 = vshrl.u32 %v2336, 7
        %v2338 = vsub.s32 6, %v2337
        %v2339 = vrot.slane %v1631, %v2338
        %v2340 = vlaneseq
        %v2341 = vshrl.u32 %v2340, 7
        %v2342 = vsub.s32 6, %v2341
        %v2343 = vrot.slane %v1632, %v2342
        %v2344 = vlaneseq
        %v2345 = vshrl.u32 %v2344, 7
        %v2346 = vsub.s32 6, %v2345
        %v2347 = vrot.slane %v1633, %v2346
        %v2348 = vmul.f32 %v2330, %v2335
        %v2349 = vmul.f32 %v2330, %v2339
        %v2350 = vmul.f32 %v2330, %v2343
        %v2351 = vmul.f32 %v2330, %v2347
        %v2352 = vadd.f32 %v2321, %v2348
        %v2353 = vadd.f32 %v2322, %v2349
        %v2354 = vadd.f32 %v2323, %v2350
        %v2355 = vadd.f32 %v2324, %v2351
        %s2356 = scalar_lea.vmem %s5, 46
        %v2357 = vld [vmem:[%s2356] sm:$0x3]
        %2359 = vset.pattern.permute.xlu0 0
        %2360 = vperm.xlu0 %2359, %v2357
        %v2361 = vpop.permute.xlu0 %2360
        %v2363 = vlaneseq
        %v2364 = vshrl.u32 %v2363, 7
        %v2365 = vsub.s32 7, %v2364
        %v2366 = vrot.slane %v1630, %v2365
        %v2367 = vlaneseq
        %v2368 = vshrl.u32 %v2367, 7
        %v2369 = vsub.s32 7, %v2368
        %v2370 = vrot.slane %v1631, %v2369
        %v2371 = vlaneseq
        %v2372 = vshrl.u32 %v2371, 7
        %v2373 = vsub.s32 7, %v2372
        %v2374 = vrot.slane %v1632, %v2373
        %v2375 = vlaneseq
        %v2376 = vshrl.u32 %v2375, 7
        %v2377 = vsub.s32 7, %v2376
        %v2378 = vrot.slane %v1633, %v2377
        %v2379 = vmul.f32 %v2361, %v2366
        %v2380 = vmul.f32 %v2361, %v2370
        %v2381 = vmul.f32 %v2361, %v2374
        %v2382 = vmul.f32 %v2361, %v2378
        %v2383 = vadd.f32 %v2352, %v2379
        %v2384 = vadd.f32 %v2353, %v2380
        %v2385 = vadd.f32 %v2354, %v2381
        %v2386 = vadd.f32 %v2355, %v2382
        %s2387 = scalar_lea.vmem %s5, 48
        %v2388 = vld [vmem:[%s2387] sm:$0x3]
        %2390 = vset.pattern.permute.xlu0 0
        %2391 = vperm.xlu0 %2390, %v2388
        %v2392 = vpop.permute.xlu0 %2391
        %v2394 = vlaneseq
        %v2395 = vshrl.u32 %v2394, 7
        %v2396 = vsub.s32 0, %v2395
        %v2397 = vrot.slane %v1634, %v2396
        %v2398 = vlaneseq
        %v2399 = vshrl.u32 %v2398, 7
        %v2400 = vsub.s32 0, %v2399
        %v2401 = vrot.slane %v1635, %v2400
        %v2402 = vlaneseq
        %v2403 = vshrl.u32 %v2402, 7
        %v2404 = vsub.s32 0, %v2403
        %v2405 = vrot.slane %v1636, %v2404
        %v2406 = vlaneseq
        %v2407 = vshrl.u32 %v2406, 7
        %v2408 = vsub.s32 0, %v2407
        %v2409 = vrot.slane %v1637, %v2408
        %v2410 = vmul.f32 %v2392, %v2397
        %v2411 = vmul.f32 %v2392, %v2401
        %v2412 = vmul.f32 %v2392, %v2405
        %v2413 = vmul.f32 %v2392, %v2409
        %v2414 = vadd.f32 %v2383, %v2410
        %v2415 = vadd.f32 %v2384, %v2411
        %v2416 = vadd.f32 %v2385, %v2412
        %v2417 = vadd.f32 %v2386, %v2413
        %s2418 = scalar_lea.vmem %s5, 50
        %v2419 = vld [vmem:[%s2418] sm:$0x3]
        %2421 = vset.pattern.permute.xlu0 0
        %2422 = vperm.xlu0 %2421, %v2419
        %v2423 = vpop.permute.xlu0 %2422
        %v2425 = vlaneseq
        %v2426 = vshrl.u32 %v2425, 7
        %v2427 = vsub.s32 1, %v2426
        %v2428 = vrot.slane %v1634, %v2427
        %v2429 = vlaneseq
        %v2430 = vshrl.u32 %v2429, 7
        %v2431 = vsub.s32 1, %v2430
        %v2432 = vrot.slane %v1635, %v2431
        %v2433 = vlaneseq
        %v2434 = vshrl.u32 %v2433, 7
        %v2435 = vsub.s32 1, %v2434
        %v2436 = vrot.slane %v1636, %v2435
        %v2437 = vlaneseq
        %v2438 = vshrl.u32 %v2437, 7
        %v2439 = vsub.s32 1, %v2438
        %v2440 = vrot.slane %v1637, %v2439
        %v2441 = vmul.f32 %v2423, %v2428
        %v2442 = vmul.f32 %v2423, %v2432
        %v2443 = vmul.f32 %v2423, %v2436
        %v2444 = vmul.f32 %v2423, %v2440
        %v2445 = vadd.f32 %v2414, %v2441
        %v2446 = vadd.f32 %v2415, %v2442
        %v2447 = vadd.f32 %v2416, %v2443
        %v2448 = vadd.f32 %v2417, %v2444
        %s2449 = scalar_lea.vmem %s5, 52
        %v2450 = vld [vmem:[%s2449] sm:$0x3]
        %2452 = vset.pattern.permute.xlu0 0
        %2453 = vperm.xlu0 %2452, %v2450
        %v2454 = vpop.permute.xlu0 %2453
        %v2456 = vlaneseq
        %v2457 = vshrl.u32 %v2456, 7
        %v2458 = vsub.s32 2, %v2457
        %v2459 = vrot.slane %v1634, %v2458
        %v2460 = vlaneseq
        %v2461 = vshrl.u32 %v2460, 7
        %v2462 = vsub.s32 2, %v2461
        %v2463 = vrot.slane %v1635, %v2462
        %v2464 = vlaneseq
        %v2465 = vshrl.u32 %v2464, 7
        %v2466 = vsub.s32 2, %v2465
        %v2467 = vrot.slane %v1636, %v2466
        %v2468 = vlaneseq
        %v2469 = vshrl.u32 %v2468, 7
        %v2470 = vsub.s32 2, %v2469
        %v2471 = vrot.slane %v1637, %v2470
        %v2472 = vmul.f32 %v2454, %v2459
        %v2473 = vmul.f32 %v2454, %v2463
        %v2474 = vmul.f32 %v2454, %v2467
        %v2475 = vmul.f32 %v2454, %v2471
        %v2476 = vadd.f32 %v2445, %v2472
        %v2477 = vadd.f32 %v2446, %v2473
        %v2478 = vadd.f32 %v2447, %v2474
        %v2479 = vadd.f32 %v2448, %v2475
        %s2480 = scalar_lea.vmem %s5, 54
        %v2481 = vld [vmem:[%s2480] sm:$0x3]
        %2483 = vset.pattern.permute.xlu0 0
        %2484 = vperm.xlu0 %2483, %v2481
        %v2485 = vpop.permute.xlu0 %2484
        %v2487 = vlaneseq
        %v2488 = vshrl.u32 %v2487, 7
        %v2489 = vsub.s32 3, %v2488
        %v2490 = vrot.slane %v1634, %v2489
        %v2491 = vlaneseq
        %v2492 = vshrl.u32 %v2491, 7
        %v2493 = vsub.s32 3, %v2492
        %v2494 = vrot.slane %v1635, %v2493
        %v2495 = vlaneseq
        %v2496 = vshrl.u32 %v2495, 7
        %v2497 = vsub.s32 3, %v2496
        %v2498 = vrot.slane %v1636, %v2497
        %v2499 = vlaneseq
        %v2500 = vshrl.u32 %v2499, 7
        %v2501 = vsub.s32 3, %v2500
        %v2502 = vrot.slane %v1637, %v2501
        %v2503 = vmul.f32 %v2485, %v2490
        %v2504 = vmul.f32 %v2485, %v2494
        %v2505 = vmul.f32 %v2485, %v2498
        %v2506 = vmul.f32 %v2485, %v2502
        %v2507 = vadd.f32 %v2476, %v2503
        %v2508 = vadd.f32 %v2477, %v2504
        %v2509 = vadd.f32 %v2478, %v2505
        %v2510 = vadd.f32 %v2479, %v2506
        %s2511 = scalar_lea.vmem %s5, 56
        %v2512 = vld [vmem:[%s2511] sm:$0x3]
        %2514 = vset.pattern.permute.xlu0 0
        %2515 = vperm.xlu0 %2514, %v2512
        %v2516 = vpop.permute.xlu0 %2515
        %v2518 = vlaneseq
        %v2519 = vshrl.u32 %v2518, 7
        %v2520 = vsub.s32 4, %v2519
        %v2521 = vrot.slane %v1634, %v2520
        %v2522 = vlaneseq
        %v2523 = vshrl.u32 %v2522, 7
        %v2524 = vsub.s32 4, %v2523
        %v2525 = vrot.slane %v1635, %v2524
        %v2526 = vlaneseq
        %v2527 = vshrl.u32 %v2526, 7
        %v2528 = vsub.s32 4, %v2527
        %v2529 = vrot.slane %v1636, %v2528
        %v2530 = vlaneseq
        %v2531 = vshrl.u32 %v2530, 7
        %v2532 = vsub.s32 4, %v2531
        %v2533 = vrot.slane %v1637, %v2532
        %v2534 = vmul.f32 %v2516, %v2521
        %v2535 = vmul.f32 %v2516, %v2525
        %v2536 = vmul.f32 %v2516, %v2529
        %v2537 = vmul.f32 %v2516, %v2533
        %v2538 = vadd.f32 %v2507, %v2534
        %v2539 = vadd.f32 %v2508, %v2535
        %v2540 = vadd.f32 %v2509, %v2536
        %v2541 = vadd.f32 %v2510, %v2537
        %s2542 = scalar_lea.vmem %s5, 58
        %v2543 = vld [vmem:[%s2542] sm:$0x3]
        %2545 = vset.pattern.permute.xlu0 0
        %2546 = vperm.xlu0 %2545, %v2543
        %v2547 = vpop.permute.xlu0 %2546
        %v2549 = vlaneseq
        %v2550 = vshrl.u32 %v2549, 7
        %v2551 = vsub.s32 5, %v2550
        %v2552 = vrot.slane %v1634, %v2551
        %v2553 = vlaneseq
        %v2554 = vshrl.u32 %v2553, 7
        %v2555 = vsub.s32 5, %v2554
        %v2556 = vrot.slane %v1635, %v2555
        %v2557 = vlaneseq
        %v2558 = vshrl.u32 %v2557, 7
        %v2559 = vsub.s32 5, %v2558
        %v2560 = vrot.slane %v1636, %v2559
        %v2561 = vlaneseq
        %v2562 = vshrl.u32 %v2561, 7
        %v2563 = vsub.s32 5, %v2562
        %v2564 = vrot.slane %v1637, %v2563
        %v2565 = vmul.f32 %v2547, %v2552
        %v2566 = vmul.f32 %v2547, %v2556
        %v2567 = vmul.f32 %v2547, %v2560
        %v2568 = vmul.f32 %v2547, %v2564
        %v2569 = vadd.f32 %v2538, %v2565
        %v2570 = vadd.f32 %v2539, %v2566
        %v2571 = vadd.f32 %v2540, %v2567
        %v2572 = vadd.f32 %v2541, %v2568
        %s2573 = scalar_lea.vmem %s5, 60
        %v2574 = vld [vmem:[%s2573] sm:$0x3]
        %2576 = vset.pattern.permute.xlu0 0
        %2577 = vperm.xlu0 %2576, %v2574
        %v2578 = vpop.permute.xlu0 %2577
        %v2580 = vlaneseq
        %v2581 = vshrl.u32 %v2580, 7
        %v2582 = vsub.s32 6, %v2581
        %v2583 = vrot.slane %v1634, %v2582
        %v2584 = vlaneseq
        %v2585 = vshrl.u32 %v2584, 7
        %v2586 = vsub.s32 6, %v2585
        %v2587 = vrot.slane %v1635, %v2586
        %v2588 = vlaneseq
        %v2589 = vshrl.u32 %v2588, 7
        %v2590 = vsub.s32 6, %v2589
        %v2591 = vrot.slane %v1636, %v2590
        %v2592 = vlaneseq
        %v2593 = vshrl.u32 %v2592, 7
        %v2594 = vsub.s32 6, %v2593
        %v2595 = vrot.slane %v1637, %v2594
        %v2596 = vmul.f32 %v2578, %v2583
        %v2597 = vmul.f32 %v2578, %v2587
        %v2598 = vmul.f32 %v2578, %v2591
        %v2599 = vmul.f32 %v2578, %v2595
        %v2600 = vadd.f32 %v2569, %v2596
        %v2601 = vadd.f32 %v2570, %v2597
        %v2602 = vadd.f32 %v2571, %v2598
        %v2603 = vadd.f32 %v2572, %v2599
        %s2604 = scalar_lea.vmem %s5, 62
        %v2605 = vld [vmem:[%s2604] sm:$0x3]
        %2607 = vset.pattern.permute.xlu0 0
        %2608 = vperm.xlu0 %2607, %v2605
        %v2609 = vpop.permute.xlu0 %2608
        %v2611 = vlaneseq
        %v2612 = vshrl.u32 %v2611, 7
        %v2613 = vsub.s32 7, %v2612
        %v2614 = vrot.slane %v1634, %v2613
        %v2615 = vlaneseq
        %v2616 = vshrl.u32 %v2615, 7
        %v2617 = vsub.s32 7, %v2616
        %v2618 = vrot.slane %v1635, %v2617
        %v2619 = vlaneseq
        %v2620 = vshrl.u32 %v2619, 7
        %v2621 = vsub.s32 7, %v2620
        %v2622 = vrot.slane %v1636, %v2621
        %v2623 = vlaneseq
        %v2624 = vshrl.u32 %v2623, 7
        %v2625 = vsub.s32 7, %v2624
        %v2626 = vrot.slane %v1637, %v2625
        %v2627 = vmul.f32 %v2609, %v2614
        %v2628 = vmul.f32 %v2609, %v2618
        %v2629 = vmul.f32 %v2609, %v2622
        %v2630 = vmul.f32 %v2609, %v2626
        %v2631 = vadd.f32 %v2600, %v2627
        %v2632 = vadd.f32 %v2601, %v2628
        %v2633 = vadd.f32 %v2602, %v2629
        %v2634 = vadd.f32 %v2603, %v2630
        %v2639 = vcombine.low %v2631, %v2632
        %v2640 = vcombine.low %v2633, %v2634
        %v2642 = vunpack.c.l.s4 1983009808
        %v2643 = vunpack.c.0.s8 %v2642
        %v2644 = vlaneseq
        %v2645 = vshrl.u32 %v2644, 7
        %v2646 = vsub.s32 %v2643, %v2645
        %v2647 = vrot.slane %v2639, %v2646
        %v2649 = vunpack.c.l.s4 1983009808
        %v2650 = vunpack.c.0.s8 %v2649
        %v2651 = vlaneseq
        %v2652 = vshrl.u32 %v2651, 7
        %v2653 = vsub.s32 %v2650, %v2652
        %v2654 = vrot.slane %v2640, %v2653
        %v2655 = vcombine.low %v2647, %v2654
        %2657 = vst [vmem:[%s272] sm:$0xff] %v2655
        %s2658 = sand.u32 %s181, 1
        %s2659 = scalar_lea.sflag [#allocation3], %s2658
        %s2660 = sand.u32 %s181, 1
        %s2661 = smul.addr %s2660, 8
        %s2662 = scalar_lea.vmem [#allocation2], %s2661
        // Predicated region
        $region49: #{tpu_custom_call.1} parent=47 // pred_check
          %p2663 = pneg %p191
        $region50: #{tpu_custom_call.1} parent=47 // pred_check_branch
          %2665 = sbr.rel (%p2663) target = $region52
        $region51: #{tpu_custom_call.1} parent=47 // pred_region
          %s2666 = smul.u32 4, %s21
          %s2668 = ssub.s32 128, 128
          %2669 = vsyncadd %s2659, %s2668
          %s2670 = smul.addr %s2666, 32
          %s2671 = scalar_lea.hbm %s7, %s2670
          %s2673 = sshll.u32 %s2662, 4
          %s2674 = int_to_ptr.vmem [resolvable:$true] %s2673
          %2676 = dma.vmem_to_hbm [thread:$0]  %s2674, 128, %s2671, %s2659
        $region52: #{tpu_custom_call.1} parent=47 // pred_fallthru
          _
      $region48: #{tpu_custom_call.1} parent=5 // pred_fallthru
        _
      %p2677 = scmp.le.s32.totalorder 2, %s16
      // Predicated region
      $region53: #{tpu_custom_call.1} parent=5 // pred_check
        %p2678 = pneg %p2677
      $region54: #{tpu_custom_call.1} parent=5 // pred_check_branch
        %2680 = sbr.rel (%p2678) target = $region56
      $region55: #{tpu_custom_call.1} parent=5 // pred_region
        %s2681 = ssub.s32 %s16, 2
        // Predicated region
        $region57: #{tpu_custom_call.1} parent=55 // pred_check
          %p2682 = pneg %p197
        $region58: #{tpu_custom_call.1} parent=55 // pred_check_branch
          %2684 = sbr.rel (%p2682) target = $region60
        $region59: #{tpu_custom_call.1} parent=55 // pred_region
          %s2685 = sand.u32 %s182, 1
          %s2686 = scalar_lea.sflag [#allocation3], %s2685
          %s2687 = sand.u32 %s182, 1
          %s2688 = smul.addr %s2687, 8
          %s2689 = scalar_lea.vmem [#allocation2], %s2688
          %2690 = dma.done %s2686, 128
        $region60: #{tpu_custom_call.1} parent=55 // pred_fallthru
          _
      $region56: #{tpu_custom_call.1} parent=5 // pred_fallthru
        _
    $region6: #{tpu_custom_call.1} parent=1 // loop_footer
      %s20 = sadd.s32 1, %s16
    $region7: #{tpu_custom_call.1} parent=1 // loop_footer_branch
      %15 = sbr.rel target = $region3
    $region8: #{tpu_custom_call.1} parent=1 // loop_exit
      _
    %2691 = vsyncpa [#allocation3], 1
    %s2692 = scalar_lea.sflag [#allocation3], 1
    %2693 = vsyncpa %s2692, 1

</llo_original>
